<compile_context>
chip_gen: v6e
topology: v6e:2x2x1
jax: 0.10.0
libtpu: 0.0.40
codegen_flags: <defaults>
</compile_context>

<pallas_src>
import jax
import jax.numpy as jnp
from jax import lax
from jax.experimental import pallas as pl
from jax.experimental.pallas import tpu as pltpu


def _lstm_kernel(xg_ref, lens_ref, whh_ref, wlin_ref, blin_ref,
                 out_ref, h_sc, c_sc):
    tb = pl.program_id(1)                       # time-block index (sequential)
    Tt, Bt, _ = xg_ref.shape
    Hp = h_sc.shape[-1]

    @pl.when(tb == 0)
    def _init():
        h_sc[...] = jnp.zeros_like(h_sc)
        c_sc[...] = jnp.zeros_like(c_sc)

    lens = lens_ref[...]                        # (Bt, 1) int32
    whh = whh_ref[...]                          # (Hp, 4Hp) bf16
    t0 = tb * Tt

    def step(tt, carry):
        h_bf, c = carry                         # (Bt,Hp) bf16, (Bt,Hp) f32
        # xg_ref[tt] is a tile-aligned (Bt, 4Hp) slab; recurrent matmul on MXU.
        g = xg_ref[tt] + jnp.dot(h_bf, whh, preferred_element_type=jnp.float32)
        i_g = jax.nn.sigmoid(g[:, 0 * Hp:1 * Hp])
        f_g = jax.nn.sigmoid(g[:, 1 * Hp:2 * Hp])
        g_g = jnp.tanh(g[:, 2 * Hp:3 * Hp])
        o_g = jax.nn.sigmoid(g[:, 3 * Hp:4 * Hp])
        c_new = f_g * c + i_g * g_g
        h_new = (o_g * jnp.tanh(c_new)).astype(jnp.bfloat16)
        # pack_padded_sequence semantics: freeze state once t >= seq_len[b].
        keep = (t0 + tt) < lens                 # (Bt, 1) bool
        h_bf = jnp.where(keep, h_new, h_bf)
        c = jnp.where(keep, c_new, c)
        return h_bf, c

    h_bf, c = lax.fori_loop(0, Tt, step, (h_sc[...], c_sc[...]),
                            unroll=min(Tt, 8))
    h_sc[...] = h_bf
    c_sc[...] = c

    @pl.when(tb == pl.num_programs(1) - 1)
    def _final():
        logits = (jnp.dot(h_bf, wlin_ref[...],
                          preferred_element_type=jnp.float32)
                  + blin_ref[...])              # (Bt, Op); padded logits = -1e30
        mx = jnp.max(logits, axis=-1, keepdims=True)
        e = jnp.exp(logits - mx)
        out_ref[...] = e / jnp.sum(e, axis=-1, keepdims=True)   # exact softmax


def _round_up(x, m):
    return ((x + m - 1) // m) * m


def _pad_gate_dim(w, H, Hp):
    """w: (4H, ...) stacked [i, f, g, o] -> (4Hp, ...), zero-padded per gate."""
    parts = []
    for k in range(4):
        blk = w[k * H:(k + 1) * H]
        pad = [(0, Hp - H)] + [(0, 0)] * (w.ndim - 1)
        parts.append(jnp.pad(blk, pad))
    return jnp.concatenate(parts, axis=0)


def _const_block(shape):
    """Full-array block whose index never changes: single-buffer it in VMEM."""
    n = len(shape)
    idx = lambda b, t, _n=n: (0,) * _n
    try:
        return pl.BlockSpec(shape, idx, pipeline_mode=pl.Buffered(1))
    except TypeError:   # Pallas version without pipeline_mode support
        return pl.BlockSpec(shape, idx)


def rnn_w2v_forward(tokens, seq_lengths, params, *, time_block=32, batch_block=64):
    """tokens: (B, T) int32, seq_lengths: (B,) int32."""
    emb_w = params["emb"]            # (V, E)
    w_ih = params["w_ih"]            # (4H, E)
    w_hh = params["w_hh"]            # (4H, H)
    b_ih = params["b_ih"]            # (4H,)
    b_hh = params["b_hh"]            # (4H,)
    w_lin = params["w_lin"]          # (O, H)
    b_lin = params["b_lin"]          # (O,)

    B, T = tokens.shape
    H = w_hh.shape[1]
    O = w_lin.shape[0]

    # TPU-friendly padded sizes.
    Hp = _round_up(H, 128)
    Op = _round_up(O, 128)
    Bt = min(_round_up(B, 8), _round_up(batch_block, 8))
    Bp = _round_up(B, Bt)
    Tt = max(int(time_block), 1)     # leading (time-major) axis: no layout quantum
    Tp = _round_up(T, Tt)

    tokens_p = jnp.zeros((Bp, Tp), jnp.int32).at[:B, :T].set(tokens)
    lens_p = jnp.zeros((Bp, 1), jnp.int32).at[:B, 0].set(
        seq_lengths.astype(jnp.int32))

    # Pad each gate block of H to Hp: padded hidden units get zero weights/bias
    # -> gate preactivation 0 -> c_pad stays 0, h_pad stays 0: math unchanged.
    w_ih_p = _pad_gate_dim(w_ih, H, Hp)                           # (4Hp, E)
    w_hh_p = jnp.pad(_pad_gate_dim(w_hh, H, Hp),
                     ((0, 0), (0, Hp - H)))                       # (4Hp, Hp)
    b_all_p = _pad_gate_dim(b_ih + b_hh, H, Hp)                   # (4Hp,)

    # Embedding gather + input projection + bias in XLA (f32), TIME-MAJOR output.
    x_emb = jnp.take(emb_w, tokens_p.T, axis=0)                   # (Tp, Bp, E) f32
    xg = (jnp.einsum('tbe,ge->tbg', x_emb, w_ih_p,
                     preferred_element_type=jnp.float32)
          + b_all_p).astype(jnp.float32)                          # (Tp, Bp, 4Hp)

    whh_t = jnp.transpose(w_hh_p).astype(jnp.bfloat16)            # (Hp, 4Hp)

    w_lin_p = jnp.pad(w_lin, ((0, Op - O), (0, Hp - H)))          # (Op, Hp)
    wlin_t = jnp.transpose(w_lin_p).astype(jnp.bfloat16)          # (Hp, Op)
    # Padded output logits forced to -1e30 so the softmax ignores them.
    blin = jnp.full((1, Op), -1e30, jnp.float32).at[0, :O].set(
        b_lin.astype(jnp.float32))

    # VMEM budget. Weights conservatively counted 2x in case single-buffering
    # (Buffered(1)) is unavailable and the fallback double-buffers them.
    wbuf = 2
    est_bytes = (
        2 * Tt * Bt * 4 * Hp * 4                      # xg stream (f32, 2 bufs)
        + wbuf * (Hp * 4 * Hp + Hp * Op) * 2          # bf16 W_hh, W_lin
        + wbuf * (Op * 4 + Bt * 128 * 4)              # b_lin + lens (lane-padded)
        + 2 * Bt * Op * 4                             # output block
        + Bt * Hp * (2 + 4)                           # h (bf16) + c (f32) scratch
    )
    vmem_limit = int(min(max(2 * est_bytes, 16 * 1024 * 1024), 48 * 1024 * 1024))

    out = pl.pallas_call(
        _lstm_kernel,
        out_shape=jax.ShapeDtypeStruct((Bp, Op), jnp.float32),
        grid_spec=pltpu.PrefetchScalarGridSpec(
            num_scalar_prefetch=0,
            grid=(Bp // Bt, Tp // Tt),                        # (batch, time)
            in_specs=[
                pl.BlockSpec((Tt, Bt, 4 * Hp), lambda b, t: (t, b, 0)),  # xg block
                pl.BlockSpec((Bt, 1), lambda b, t: (b, 0)),              # seq lens
                _const_block((Hp, 4 * Hp)),                              # W_hh^T
                _const_block((Hp, Op)),                                  # W_lin^T
                _const_block((1, Op)),                                   # b_lin
            ],
            out_specs=pl.BlockSpec((Bt, Op), lambda b, t: (b, 0)),
            scratch_shapes=[
                pltpu.VMEM((Bt, Hp), jnp.bfloat16),   # h state (bf16 MXU feed)
                pltpu.VMEM((Bt, Hp), jnp.float32),    # c state (f32 accumulator)
            ],
        ),
        compiler_params=pltpu.CompilerParams(
            dimension_semantics=("parallel", "arbitrary"),
            vmem_limit_bytes=vmem_limit),
    )(xg, lens_p, whh_t, wlin_t, blin)

    return out[:B, :O]   # (B, O) softmax probabilities


def _reference_forward(tokens, seq_lengths, params):
    """Pure-JAX f32 reference matching the PyTorch module semantics."""
    emb_w = params["emb"]
    w_ih, w_hh = params["w_ih"], params["w_hh"]
    b = params["b_ih"] + params["b_hh"]
    w_lin, b_lin = params["w_lin"], params["b_lin"]
    B, T = tokens.shape
    H = w_hh.shape[1]
    x = jnp.take(emb_w, tokens, axis=0)
    h = jnp.zeros((B, H), jnp.float32)
    c = jnp.zeros((B, H), jnp.float32)
    for t in range(T):
        g = x[:, t, :] @ w_ih.T + h @ w_hh.T + b
        i_g = jax.nn.sigmoid(g[:, 0 * H:1 * H])
        f_g = jax.nn.sigmoid(g[:, 1 * H:2 * H])
        g_g = jnp.tanh(g[:, 2 * H:3 * H])
        o_g = jax.nn.sigmoid(g[:, 3 * H:4 * H])
        c_new = f_g * c + i_g * g_g
        h_new = o_g * jnp.tanh(c_new)
        m = (t < seq_lengths)[:, None].astype(jnp.float32)
        h = h + m * (h_new - h)
        c = c + m * (c_new - c)
    logits = h @ w_lin.T + b_lin
    return jax.nn.softmax(logits, axis=-1)


def init_params(key, vocab_size, emb_dim, hid_dim, out_dim):
    ks = jax.random.split(key, 7)
    scale = 0.1
    return {
        "emb":   scale * jax.random.normal(ks[0], (vocab_size, emb_dim), jnp.float32),
        "w_ih":  scale * jax.random.normal(ks[1], (4 * hid_dim, emb_dim), jnp.float32),
        "w_hh":  scale * jax.random.normal(ks[2], (4 * hid_dim, hid_dim), jnp.float32),
        "b_ih":  scale * jax.random.normal(ks[3], (4 * hid_dim,), jnp.float32),
        "b_hh":  scale * jax.random.normal(ks[4], (4 * hid_dim,), jnp.float32),
        "w_lin": scale * jax.random.normal(ks[5], (out_dim, hid_dim), jnp.float32),
        "b_lin": scale * jax.random.normal(ks[6], (out_dim,), jnp.float32),
    }


if __name__ == "__main__":
    VOCAB, EMB, HID, OUT = 20, 16, 32, 4
    B, T = 4, 20   # time_block=8 below -> 3 sequential time blocks (tests carry)

    key = jax.random.PRNGKey(0)
    k_par, k_tok = jax.random.split(key)
    params = init_params(k_par, VOCAB, EMB, HID, OUT)

    tokens = jax.random.randint(k_tok, (B, T), 0, VOCAB, dtype=jnp.int32)
    # pack_padded_sequence (enforce_sorted=True) expects descending lengths.
    seq_lengths = jnp.array([20, 15, 9, 3], dtype=jnp.int32)

    probs = rnn_w2v_forward(tokens, seq_lengths, params, time_block=8)
    probs = jax.block_until_ready(probs)

    ref = _reference_forward(tokens, seq_lengths, params)

    assert probs.shape == (B, OUT)
    # exact-divide softmax: rows sum to 1 tightly
    assert bool(jnp.all(jnp.abs(jnp.sum(probs, axis=1) - 1.0) < 1e-4))
    # bf16 recurrence (W_hh, h) with f32 accumulation vs f32 reference
    assert bool(jnp.max(jnp.abs(probs - ref)) < 3e-2)
    print("KERNEL_OK")
</pallas_src>

<mosaic_0001>
module attributes {stable_mosaic.version = 11 : i64} {
  func.func @_lstm_kernel(%arg0: i32, %arg1: i32, %arg2: memref<8x8x512xf32, #tpu.memory_space<vmem>>, %arg3: memref<8x1xi32, #tpu.memory_space<vmem>>, %arg4: memref<128x512xbf16, #tpu.memory_space<vmem>>, %arg5: memref<128x128xbf16, #tpu.memory_space<vmem>>, %arg6: memref<1x128xf32, #tpu.memory_space<vmem>>, %arg7: memref<8x128xf32, #tpu.memory_space<vmem>>, %arg8: memref<8x128xbf16, #tpu.memory_space<vmem>>, %arg9: memref<8x128xf32, #tpu.memory_space<vmem>>) attributes {dimension_semantics = [#tpu.dimension_semantics<parallel>, #tpu.dimension_semantics<arbitrary>], iteration_bounds = array<i64: 1, 3>, scalar_prefetch = 0 : i64, scratch_operands = 2 : i64, tpu.core_type = #tpu.core_type<tc>, window_params = [{transform_indices = @transform_0, window_bounds = array<i64: 8, 8, 512>}, {transform_indices = @transform_1, window_bounds = array<i64: 8, 1>}, {pipeline_mode = #tpu.pipeline_mode<synchronous>, transform_indices = @transform_2, window_bounds = array<i64: 128, 512>}, {pipeline_mode = #tpu.pipeline_mode<synchronous>, transform_indices = @transform_3, window_bounds = array<i64: 128, 128>}, {pipeline_mode = #tpu.pipeline_mode<synchronous>, transform_indices = @transform_4, window_bounds = array<i64: 1, 128>}, {transform_indices = @transform_5, window_bounds = array<i64: 8, 128>}]} {
    %c0_i32 = arith.constant 0 : i32
    %0 = arith.cmpi eq, %arg1, %c0_i32 : i32
    %1 = arith.extui %0 : i1 to i32
    %c0_i32_0 = arith.constant 0 : i32
    %2 = arith.cmpi ne, %1, %c0_i32_0 : i32
    scf.if %2 {
      %cst_63 = arith.constant 0.000000e+00 : bf16
      %333 = vector.broadcast %cst_63 : bf16 to vector<8x128xbf16>
      %c0_64 = arith.constant 0 : index
      %c0_65 = arith.constant 0 : index
      %334 = vector.load %arg8[%c0_64, %c0_65] : memref<8x128xbf16, #tpu.memory_space<vmem>>, vector<8x128xbf16>
      tpu.vector_store %arg8[%c0_64, %c0_65], %333 {strides = array<i32>} : memref<8x128xbf16, #tpu.memory_space<vmem>>, vector<8x128xbf16>,
      %cst_66 = arith.constant 0.000000e+00 : f32
      %335 = vector.broadcast %cst_66 : f32 to vector<8x128xf32>
      %c0_67 = arith.constant 0 : index
      %c0_68 = arith.constant 0 : index
      %336 = vector.load %arg9[%c0_67, %c0_68] : memref<8x128xf32, #tpu.memory_space<vmem>>, vector<8x128xf32>
      tpu.vector_store %arg9[%c0_67, %c0_68], %335 {strides = array<i32>} : memref<8x128xf32, #tpu.memory_space<vmem>>, vector<8x128xf32>,
    } else {
    }
    %c0 = arith.constant 0 : index
    %c0_1 = arith.constant 0 : index
    %3 = vector.load %arg3[%c0, %c0_1] : memref<8x1xi32, #tpu.memory_space<vmem>>, vector<8x1xi32>
    %c0_2 = arith.constant 0 : index
    %c0_3 = arith.constant 0 : index
    %4 = vector.load %arg4[%c0_2, %c0_3] : memref<128x512xbf16, #tpu.memory_space<vmem>>, vector<128x512xbf16>
    %c8_i32 = arith.constant 8 : i32
    %5 = arith.muli %arg1, %c8_i32 : i32
    %c0_4 = arith.constant 0 : index
    %c0_5 = arith.constant 0 : index
    %6 = vector.load %arg8[%c0_4, %c0_5] : memref<8x128xbf16, #tpu.memory_space<vmem>>, vector<8x128xbf16>
    %c0_6 = arith.constant 0 : index
    %c0_7 = arith.constant 0 : index
    %7 = vector.load %arg9[%c0_6, %c0_7] : memref<8x128xf32, #tpu.memory_space<vmem>>, vector<8x128xf32>
    %c0_i32_8 = arith.constant 0 : i32
    %8 = arith.index_cast %c0_i32_8 : i32 to index
    %c0_9 = arith.constant 0 : index
    %c0_10 = arith.constant 0 : index
    %9 = vector.load %arg2[%8, %c0_9, %c0_10] : memref<8x8x512xf32, #tpu.memory_space<vmem>>, vector<1x8x512xf32>
    %10 = vector.shape_cast %9 : vector<1x8x512xf32> to vector<8x512xf32>
    %cst = arith.constant dense<0.000000e+00> : vector<8x512xf32>
    %11 = tpu.matmul %6, %4, %cst {dimension_numbers = #tpu.dot_dimension_numbers<[1], [0], [0], [1], [0, 0, 1, 1], [], []>} : vector<8x128xbf16>, vector<128x512xbf16>, vector<8x512xf32> -> vector<8x512xf32>
    %12 = arith.addf %10, %11 : vector<8x512xf32>
    %13 = vector.extract_strided_slice %12 {offsets = [0, 0], sizes = [8, 128], strides = [1, 1]} : vector<8x512xf32> to vector<8x128xf32>
    %14 = arith.negf %13 : vector<8x128xf32>
    %15 = math.exp %14 : vector<8x128xf32>
    %cst_11 = arith.constant 1.000000e+00 : f32
    %16 = vector.broadcast %cst_11 : f32 to vector<8x128xf32>
    %17 = arith.addf %16, %15 : vector<8x128xf32>
    %18 = arith.divf %16, %17 : vector<8x128xf32>
    %19 = vector.extract_strided_slice %12 {offsets = [0, 128], sizes = [8, 128], strides = [1, 1]} : vector<8x512xf32> to vector<8x128xf32>
    %20 = arith.negf %19 : vector<8x128xf32>
    %21 = math.exp %20 : vector<8x128xf32>
    %cst_12 = arith.constant 1.000000e+00 : f32
    %22 = vector.broadcast %cst_12 : f32 to vector<8x128xf32>
    %23 = arith.addf %22, %21 : vector<8x128xf32>
    %24 = arith.divf %22, %23 : vector<8x128xf32>
    %25 = vector.extract_strided_slice %12 {offsets = [0, 256], sizes = [8, 128], strides = [1, 1]} : vector<8x512xf32> to vector<8x128xf32>
    %26 = math.tanh %25 : vector<8x128xf32>
    %27 = vector.extract_strided_slice %12 {offsets = [0, 384], sizes = [8, 128], strides = [1, 1]} : vector<8x512xf32> to vector<8x128xf32>
    %28 = arith.negf %27 : vector<8x128xf32>
    %29 = math.exp %28 : vector<8x128xf32>
    %cst_13 = arith.constant 1.000000e+00 : f32
    %30 = vector.broadcast %cst_13 : f32 to vector<8x128xf32>
    %31 = arith.addf %30, %29 : vector<8x128xf32>
    %32 = arith.divf %30, %31 : vector<8x128xf32>
    %33 = arith.mulf %24, %7 : vector<8x128xf32>
    %34 = arith.mulf %18, %26 : vector<8x128xf32>
    %35 = arith.addf %33, %34 : vector<8x128xf32>
    %36 = math.tanh %35 : vector<8x128xf32>
    %37 = arith.mulf %32, %36 : vector<8x128xf32>
    %38 = arith.truncf %37 : vector<8x128xf32> to vector<8x128xbf16>
    %39 = arith.addi %5, %c0_i32_8 : i32
    %40 = vector.broadcast %39 : i32 to vector<8x1xi32>
    %41 = arith.cmpi slt, %40, %3 : vector<8x1xi32>
    %42 = vector.shape_cast %41 : vector<8x1xi1> to vector<8x1xi1>
    %43 = vector.broadcast %42 : vector<8x1xi1> to vector<8x128xi1>
    %44 = arith.select %43, %38, %6 : vector<8x128xi1>, vector<8x128xbf16>
    %45 = vector.shape_cast %41 : vector<8x1xi1> to vector<8x1xi1>
    %46 = vector.broadcast %45 : vector<8x1xi1> to vector<8x128xi1>
    %47 = arith.select %46, %35, %7 : vector<8x128xi1>, vector<8x128xf32>
    %c1_i32 = arith.constant 1 : i32
    %48 = arith.index_cast %c1_i32 : i32 to index
    %c0_14 = arith.constant 0 : index
    %c0_15 = arith.constant 0 : index
    %49 = vector.load %arg2[%48, %c0_14, %c0_15] : memref<8x8x512xf32, #tpu.memory_space<vmem>>, vector<1x8x512xf32>
    %50 = vector.shape_cast %49 : vector<1x8x512xf32> to vector<8x512xf32>
    %cst_16 = arith.constant dense<0.000000e+00> : vector<8x512xf32>
    %51 = tpu.matmul %44, %4, %cst_16 {dimension_numbers = #tpu.dot_dimension_numbers<[1], [0], [0], [1], [0, 0, 1, 1], [], []>} : vector<8x128xbf16>, vector<128x512xbf16>, vector<8x512xf32> -> vector<8x512xf32>
    %52 = arith.addf %50, %51 : vector<8x512xf32>
    %53 = vector.extract_strided_slice %52 {offsets = [0, 0], sizes = [8, 128], strides = [1, 1]} : vector<8x512xf32> to vector<8x128xf32>
    %54 = arith.negf %53 : vector<8x128xf32>
    %55 = math.exp %54 : vector<8x128xf32>
    %cst_17 = arith.constant 1.000000e+00 : f32
    %56 = vector.broadcast %cst_17 : f32 to vector<8x128xf32>
    %57 = arith.addf %56, %55 : vector<8x128xf32>
    %58 = arith.divf %56, %57 : vector<8x128xf32>
    %59 = vector.extract_strided_slice %52 {offsets = [0, 128], sizes = [8, 128], strides = [1, 1]} : vector<8x512xf32> to vector<8x128xf32>
    %60 = arith.negf %59 : vector<8x128xf32>
    %61 = math.exp %60 : vector<8x128xf32>
    %cst_18 = arith.constant 1.000000e+00 : f32
    %62 = vector.broadcast %cst_18 : f32 to vector<8x128xf32>
    %63 = arith.addf %62, %61 : vector<8x128xf32>
    %64 = arith.divf %62, %63 : vector<8x128xf32>
    %65 = vector.extract_strided_slice %52 {offsets = [0, 256], sizes = [8, 128], strides = [1, 1]} : vector<8x512xf32> to vector<8x128xf32>
    %66 = math.tanh %65 : vector<8x128xf32>
    %67 = vector.extract_strided_slice %52 {offsets = [0, 384], sizes = [8, 128], strides = [1, 1]} : vector<8x512xf32> to vector<8x128xf32>
    %68 = arith.negf %67 : vector<8x128xf32>
    %69 = math.exp %68 : vector<8x128xf32>
    %cst_19 = arith.constant 1.000000e+00 : f32
    %70 = vector.broadcast %cst_19 : f32 to vector<8x128xf32>
    %71 = arith.addf %70, %69 : vector<8x128xf32>
    %72 = arith.divf %70, %71 : vector<8x128xf32>
    %73 = arith.mulf %64, %47 : vector<8x128xf32>
    %74 = arith.mulf %58, %66 : vector<8x128xf32>
    %75 = arith.addf %73, %74 : vector<8x128xf32>
    %76 = math.tanh %75 : vector<8x128xf32>
    %77 = arith.mulf %72, %76 : vector<8x128xf32>
    %78 = arith.truncf %77 : vector<8x128xf32> to vector<8x128xbf16>
    %79 = arith.addi %5, %c1_i32 : i32
    %80 = vector.broadcast %79 : i32 to vector<8x1xi32>
    %81 = arith.cmpi slt, %80, %3 : vector<8x1xi32>
    %82 = vector.shape_cast %81 : vector<8x1xi1> to vector<8x1xi1>
    %83 = vector.broadcast %82 : vector<8x1xi1> to vector<8x128xi1>
    %84 = arith.select %83, %78, %44 : vector<8x128xi1>, vector<8x128xbf16>
    %85 = vector.shape_cast %81 : vector<8x1xi1> to vector<8x1xi1>
    %86 = vector.broadcast %85 : vector<8x1xi1> to vector<8x128xi1>
    %87 = arith.select %86, %75, %47 : vector<8x128xi1>, vector<8x128xf32>
    %c2_i32 = arith.constant 2 : i32
    %88 = arith.index_cast %c2_i32 : i32 to index
    %c0_20 = arith.constant 0 : index
    %c0_21 = arith.constant 0 : index
    %89 = vector.load %arg2[%88, %c0_20, %c0_21] : memref<8x8x512xf32, #tpu.memory_space<vmem>>, vector<1x8x512xf32>
    %90 = vector.shape_cast %89 : vector<1x8x512xf32> to vector<8x512xf32>
    %cst_22 = arith.constant dense<0.000000e+00> : vector<8x512xf32>
    %91 = tpu.matmul %84, %4, %cst_22 {dimension_numbers = #tpu.dot_dimension_numbers<[1], [0], [0], [1], [0, 0, 1, 1], [], []>} : vector<8x128xbf16>, vector<128x512xbf16>, vector<8x512xf32> -> vector<8x512xf32>
    %92 = arith.addf %90, %91 : vector<8x512xf32>
    %93 = vector.extract_strided_slice %92 {offsets = [0, 0], sizes = [8, 128], strides = [1, 1]} : vector<8x512xf32> to vector<8x128xf32>
    %94 = arith.negf %93 : vector<8x128xf32>
    %95 = math.exp %94 : vector<8x128xf32>
    %cst_23 = arith.constant 1.000000e+00 : f32
    %96 = vector.broadcast %cst_23 : f32 to vector<8x128xf32>
    %97 = arith.addf %96, %95 : vector<8x128xf32>
    %98 = arith.divf %96, %97 : vector<8x128xf32>
    %99 = vector.extract_strided_slice %92 {offsets = [0, 128], sizes = [8, 128], strides = [1, 1]} : vector<8x512xf32> to vector<8x128xf32>
    %100 = arith.negf %99 : vector<8x128xf32>
    %101 = math.exp %100 : vector<8x128xf32>
    %cst_24 = arith.constant 1.000000e+00 : f32
    %102 = vector.broadcast %cst_24 : f32 to vector<8x128xf32>
    %103 = arith.addf %102, %101 : vector<8x128xf32>
    %104 = arith.divf %102, %103 : vector<8x128xf32>
    %105 = vector.extract_strided_slice %92 {offsets = [0, 256], sizes = [8, 128], strides = [1, 1]} : vector<8x512xf32> to vector<8x128xf32>
    %106 = math.tanh %105 : vector<8x128xf32>
    %107 = vector.extract_strided_slice %92 {offsets = [0, 384], sizes = [8, 128], strides = [1, 1]} : vector<8x512xf32> to vector<8x128xf32>
    %108 = arith.negf %107 : vector<8x128xf32>
    %109 = math.exp %108 : vector<8x128xf32>
    %cst_25 = arith.constant 1.000000e+00 : f32
    %110 = vector.broadcast %cst_25 : f32 to vector<8x128xf32>
    %111 = arith.addf %110, %109 : vector<8x128xf32>
    %112 = arith.divf %110, %111 : vector<8x128xf32>
    %113 = arith.mulf %104, %87 : vector<8x128xf32>
    %114 = arith.mulf %98, %106 : vector<8x128xf32>
    %115 = arith.addf %113, %114 : vector<8x128xf32>
    %116 = math.tanh %115 : vector<8x128xf32>
    %117 = arith.mulf %112, %116 : vector<8x128xf32>
    %118 = arith.truncf %117 : vector<8x128xf32> to vector<8x128xbf16>
    %119 = arith.addi %5, %c2_i32 : i32
    %120 = vector.broadcast %119 : i32 to vector<8x1xi32>
    %121 = arith.cmpi slt, %120, %3 : vector<8x1xi32>
    %122 = vector.shape_cast %121 : vector<8x1xi1> to vector<8x1xi1>
    %123 = vector.broadcast %122 : vector<8x1xi1> to vector<8x128xi1>
    %124 = arith.select %123, %118, %84 : vector<8x128xi1>, vector<8x128xbf16>
    %125 = vector.shape_cast %121 : vector<8x1xi1> to vector<8x1xi1>
    %126 = vector.broadcast %125 : vector<8x1xi1> to vector<8x128xi1>
    %127 = arith.select %126, %115, %87 : vector<8x128xi1>, vector<8x128xf32>
    %c3_i32 = arith.constant 3 : i32
    %128 = arith.index_cast %c3_i32 : i32 to index
    %c0_26 = arith.constant 0 : index
    %c0_27 = arith.constant 0 : index
    %129 = vector.load %arg2[%128, %c0_26, %c0_27] : memref<8x8x512xf32, #tpu.memory_space<vmem>>, vector<1x8x512xf32>
    %130 = vector.shape_cast %129 : vector<1x8x512xf32> to vector<8x512xf32>
    %cst_28 = arith.constant dense<0.000000e+00> : vector<8x512xf32>
    %131 = tpu.matmul %124, %4, %cst_28 {dimension_numbers = #tpu.dot_dimension_numbers<[1], [0], [0], [1], [0, 0, 1, 1], [], []>} : vector<8x128xbf16>, vector<128x512xbf16>, vector<8x512xf32> -> vector<8x512xf32>
    %132 = arith.addf %130, %131 : vector<8x512xf32>
    %133 = vector.extract_strided_slice %132 {offsets = [0, 0], sizes = [8, 128], strides = [1, 1]} : vector<8x512xf32> to vector<8x128xf32>
    %134 = arith.negf %133 : vector<8x128xf32>
    %135 = math.exp %134 : vector<8x128xf32>
    %cst_29 = arith.constant 1.000000e+00 : f32
    %136 = vector.broadcast %cst_29 : f32 to vector<8x128xf32>
    %137 = arith.addf %136, %135 : vector<8x128xf32>
    %138 = arith.divf %136, %137 : vector<8x128xf32>
    %139 = vector.extract_strided_slice %132 {offsets = [0, 128], sizes = [8, 128], strides = [1, 1]} : vector<8x512xf32> to vector<8x128xf32>
    %140 = arith.negf %139 : vector<8x128xf32>
    %141 = math.exp %140 : vector<8x128xf32>
    %cst_30 = arith.constant 1.000000e+00 : f32
    %142 = vector.broadcast %cst_30 : f32 to vector<8x128xf32>
    %143 = arith.addf %142, %141 : vector<8x128xf32>
    %144 = arith.divf %142, %143 : vector<8x128xf32>
    %145 = vector.extract_strided_slice %132 {offsets = [0, 256], sizes = [8, 128], strides = [1, 1]} : vector<8x512xf32> to vector<8x128xf32>
    %146 = math.tanh %145 : vector<8x128xf32>
    %147 = vector.extract_strided_slice %132 {offsets = [0, 384], sizes = [8, 128], strides = [1, 1]} : vector<8x512xf32> to vector<8x128xf32>
    %148 = arith.negf %147 : vector<8x128xf32>
    %149 = math.exp %148 : vector<8x128xf32>
    %cst_31 = arith.constant 1.000000e+00 : f32
    %150 = vector.broadcast %cst_31 : f32 to vector<8x128xf32>
    %151 = arith.addf %150, %149 : vector<8x128xf32>
    %152 = arith.divf %150, %151 : vector<8x128xf32>
    %153 = arith.mulf %144, %127 : vector<8x128xf32>
    %154 = arith.mulf %138, %146 : vector<8x128xf32>
    %155 = arith.addf %153, %154 : vector<8x128xf32>
    %156 = math.tanh %155 : vector<8x128xf32>
    %157 = arith.mulf %152, %156 : vector<8x128xf32>
    %158 = arith.truncf %157 : vector<8x128xf32> to vector<8x128xbf16>
    %159 = arith.addi %5, %c3_i32 : i32
    %160 = vector.broadcast %159 : i32 to vector<8x1xi32>
    %161 = arith.cmpi slt, %160, %3 : vector<8x1xi32>
    %162 = vector.shape_cast %161 : vector<8x1xi1> to vector<8x1xi1>
    %163 = vector.broadcast %162 : vector<8x1xi1> to vector<8x128xi1>
    %164 = arith.select %163, %158, %124 : vector<8x128xi1>, vector<8x128xbf16>
    %165 = vector.shape_cast %161 : vector<8x1xi1> to vector<8x1xi1>
    %166 = vector.broadcast %165 : vector<8x1xi1> to vector<8x128xi1>
    %167 = arith.select %166, %155, %127 : vector<8x128xi1>, vector<8x128xf32>
    %c4_i32 = arith.constant 4 : i32
    %168 = arith.index_cast %c4_i32 : i32 to index
    %c0_32 = arith.constant 0 : index
    %c0_33 = arith.constant 0 : index
    %169 = vector.load %arg2[%168, %c0_32, %c0_33] : memref<8x8x512xf32, #tpu.memory_space<vmem>>, vector<1x8x512xf32>
    %170 = vector.shape_cast %169 : vector<1x8x512xf32> to vector<8x512xf32>
    %cst_34 = arith.constant dense<0.000000e+00> : vector<8x512xf32>
    %171 = tpu.matmul %164, %4, %cst_34 {dimension_numbers = #tpu.dot_dimension_numbers<[1], [0], [0], [1], [0, 0, 1, 1], [], []>} : vector<8x128xbf16>, vector<128x512xbf16>, vector<8x512xf32> -> vector<8x512xf32>
    %172 = arith.addf %170, %171 : vector<8x512xf32>
    %173 = vector.extract_strided_slice %172 {offsets = [0, 0], sizes = [8, 128], strides = [1, 1]} : vector<8x512xf32> to vector<8x128xf32>
    %174 = arith.negf %173 : vector<8x128xf32>
    %175 = math.exp %174 : vector<8x128xf32>
    %cst_35 = arith.constant 1.000000e+00 : f32
    %176 = vector.broadcast %cst_35 : f32 to vector<8x128xf32>
    %177 = arith.addf %176, %175 : vector<8x128xf32>
    %178 = arith.divf %176, %177 : vector<8x128xf32>
    %179 = vector.extract_strided_slice %172 {offsets = [0, 128], sizes = [8, 128], strides = [1, 1]} : vector<8x512xf32> to vector<8x128xf32>
    %180 = arith.negf %179 : vector<8x128xf32>
    %181 = math.exp %180 : vector<8x128xf32>
    %cst_36 = arith.constant 1.000000e+00 : f32
    %182 = vector.broadcast %cst_36 : f32 to vector<8x128xf32>
    %183 = arith.addf %182, %181 : vector<8x128xf32>
    %184 = arith.divf %182, %183 : vector<8x128xf32>
    %185 = vector.extract_strided_slice %172 {offsets = [0, 256], sizes = [8, 128], strides = [1, 1]} : vector<8x512xf32> to vector<8x128xf32>
    %186 = math.tanh %185 : vector<8x128xf32>
    %187 = vector.extract_strided_slice %172 {offsets = [0, 384], sizes = [8, 128], strides = [1, 1]} : vector<8x512xf32> to vector<8x128xf32>
    %188 = arith.negf %187 : vector<8x128xf32>
    %189 = math.exp %188 : vector<8x128xf32>
    %cst_37 = arith.constant 1.000000e+00 : f32
    %190 = vector.broadcast %cst_37 : f32 to vector<8x128xf32>
    %191 = arith.addf %190, %189 : vector<8x128xf32>
    %192 = arith.divf %190, %191 : vector<8x128xf32>
    %193 = arith.mulf %184, %167 : vector<8x128xf32>
    %194 = arith.mulf %178, %186 : vector<8x128xf32>
    %195 = arith.addf %193, %194 : vector<8x128xf32>
    %196 = math.tanh %195 : vector<8x128xf32>
    %197 = arith.mulf %192, %196 : vector<8x128xf32>
    %198 = arith.truncf %197 : vector<8x128xf32> to vector<8x128xbf16>
    %199 = arith.addi %5, %c4_i32 : i32
    %200 = vector.broadcast %199 : i32 to vector<8x1xi32>
    %201 = arith.cmpi slt, %200, %3 : vector<8x1xi32>
    %202 = vector.shape_cast %201 : vector<8x1xi1> to vector<8x1xi1>
    %203 = vector.broadcast %202 : vector<8x1xi1> to vector<8x128xi1>
    %204 = arith.select %203, %198, %164 : vector<8x128xi1>, vector<8x128xbf16>
    %205 = vector.shape_cast %201 : vector<8x1xi1> to vector<8x1xi1>
    %206 = vector.broadcast %205 : vector<8x1xi1> to vector<8x128xi1>
    %207 = arith.select %206, %195, %167 : vector<8x128xi1>, vector<8x128xf32>
    %c5_i32 = arith.constant 5 : i32
    %208 = arith.index_cast %c5_i32 : i32 to index
    %c0_38 = arith.constant 0 : index
    %c0_39 = arith.constant 0 : index
    %209 = vector.load %arg2[%208, %c0_38, %c0_39] : memref<8x8x512xf32, #tpu.memory_space<vmem>>, vector<1x8x512xf32>
    %210 = vector.shape_cast %209 : vector<1x8x512xf32> to vector<8x512xf32>
    %cst_40 = arith.constant dense<0.000000e+00> : vector<8x512xf32>
    %211 = tpu.matmul %204, %4, %cst_40 {dimension_numbers = #tpu.dot_dimension_numbers<[1], [0], [0], [1], [0, 0, 1, 1], [], []>} : vector<8x128xbf16>, vector<128x512xbf16>, vector<8x512xf32> -> vector<8x512xf32>
    %212 = arith.addf %210, %211 : vector<8x512xf32>
    %213 = vector.extract_strided_slice %212 {offsets = [0, 0], sizes = [8, 128], strides = [1, 1]} : vector<8x512xf32> to vector<8x128xf32>
    %214 = arith.negf %213 : vector<8x128xf32>
    %215 = math.exp %214 : vector<8x128xf32>
    %cst_41 = arith.constant 1.000000e+00 : f32
    %216 = vector.broadcast %cst_41 : f32 to vector<8x128xf32>
    %217 = arith.addf %216, %215 : vector<8x128xf32>
    %218 = arith.divf %216, %217 : vector<8x128xf32>
    %219 = vector.extract_strided_slice %212 {offsets = [0, 128], sizes = [8, 128], strides = [1, 1]} : vector<8x512xf32> to vector<8x128xf32>
    %220 = arith.negf %219 : vector<8x128xf32>
    %221 = math.exp %220 : vector<8x128xf32>
    %cst_42 = arith.constant 1.000000e+00 : f32
    %222 = vector.broadcast %cst_42 : f32 to vector<8x128xf32>
    %223 = arith.addf %222, %221 : vector<8x128xf32>
    %224 = arith.divf %222, %223 : vector<8x128xf32>
    %225 = vector.extract_strided_slice %212 {offsets = [0, 256], sizes = [8, 128], strides = [1, 1]} : vector<8x512xf32> to vector<8x128xf32>
    %226 = math.tanh %225 : vector<8x128xf32>
    %227 = vector.extract_strided_slice %212 {offsets = [0, 384], sizes = [8, 128], strides = [1, 1]} : vector<8x512xf32> to vector<8x128xf32>
    %228 = arith.negf %227 : vector<8x128xf32>
    %229 = math.exp %228 : vector<8x128xf32>
    %cst_43 = arith.constant 1.000000e+00 : f32
    %230 = vector.broadcast %cst_43 : f32 to vector<8x128xf32>
    %231 = arith.addf %230, %229 : vector<8x128xf32>
    %232 = arith.divf %230, %231 : vector<8x128xf32>
    %233 = arith.mulf %224, %207 : vector<8x128xf32>
    %234 = arith.mulf %218, %226 : vector<8x128xf32>
    %235 = arith.addf %233, %234 : vector<8x128xf32>
    %236 = math.tanh %235 : vector<8x128xf32>
    %237 = arith.mulf %232, %236 : vector<8x128xf32>
    %238 = arith.truncf %237 : vector<8x128xf32> to vector<8x128xbf16>
    %239 = arith.addi %5, %c5_i32 : i32
    %240 = vector.broadcast %239 : i32 to vector<8x1xi32>
    %241 = arith.cmpi slt, %240, %3 : vector<8x1xi32>
    %242 = vector.shape_cast %241 : vector<8x1xi1> to vector<8x1xi1>
    %243 = vector.broadcast %242 : vector<8x1xi1> to vector<8x128xi1>
    %244 = arith.select %243, %238, %204 : vector<8x128xi1>, vector<8x128xbf16>
    %245 = vector.shape_cast %241 : vector<8x1xi1> to vector<8x1xi1>
    %246 = vector.broadcast %245 : vector<8x1xi1> to vector<8x128xi1>
    %247 = arith.select %246, %235, %207 : vector<8x128xi1>, vector<8x128xf32>
    %c6_i32 = arith.constant 6 : i32
    %248 = arith.index_cast %c6_i32 : i32 to index
    %c0_44 = arith.constant 0 : index
    %c0_45 = arith.constant 0 : index
    %249 = vector.load %arg2[%248, %c0_44, %c0_45] : memref<8x8x512xf32, #tpu.memory_space<vmem>>, vector<1x8x512xf32>
    %250 = vector.shape_cast %249 : vector<1x8x512xf32> to vector<8x512xf32>
    %cst_46 = arith.constant dense<0.000000e+00> : vector<8x512xf32>
    %251 = tpu.matmul %244, %4, %cst_46 {dimension_numbers = #tpu.dot_dimension_numbers<[1], [0], [0], [1], [0, 0, 1, 1], [], []>} : vector<8x128xbf16>, vector<128x512xbf16>, vector<8x512xf32> -> vector<8x512xf32>
    %252 = arith.addf %250, %251 : vector<8x512xf32>
    %253 = vector.extract_strided_slice %252 {offsets = [0, 0], sizes = [8, 128], strides = [1, 1]} : vector<8x512xf32> to vector<8x128xf32>
    %254 = arith.negf %253 : vector<8x128xf32>
    %255 = math.exp %254 : vector<8x128xf32>
    %cst_47 = arith.constant 1.000000e+00 : f32
    %256 = vector.broadcast %cst_47 : f32 to vector<8x128xf32>
    %257 = arith.addf %256, %255 : vector<8x128xf32>
    %258 = arith.divf %256, %257 : vector<8x128xf32>
    %259 = vector.extract_strided_slice %252 {offsets = [0, 128], sizes = [8, 128], strides = [1, 1]} : vector<8x512xf32> to vector<8x128xf32>
    %260 = arith.negf %259 : vector<8x128xf32>
    %261 = math.exp %260 : vector<8x128xf32>
    %cst_48 = arith.constant 1.000000e+00 : f32
    %262 = vector.broadcast %cst_48 : f32 to vector<8x128xf32>
    %263 = arith.addf %262, %261 : vector<8x128xf32>
    %264 = arith.divf %262, %263 : vector<8x128xf32>
    %265 = vector.extract_strided_slice %252 {offsets = [0, 256], sizes = [8, 128], strides = [1, 1]} : vector<8x512xf32> to vector<8x128xf32>
    %266 = math.tanh %265 : vector<8x128xf32>
    %267 = vector.extract_strided_slice %252 {offsets = [0, 384], sizes = [8, 128], strides = [1, 1]} : vector<8x512xf32> to vector<8x128xf32>
    %268 = arith.negf %267 : vector<8x128xf32>
    %269 = math.exp %268 : vector<8x128xf32>
    %cst_49 = arith.constant 1.000000e+00 : f32
    %270 = vector.broadcast %cst_49 : f32 to vector<8x128xf32>
    %271 = arith.addf %270, %269 : vector<8x128xf32>
    %272 = arith.divf %270, %271 : vector<8x128xf32>
    %273 = arith.mulf %264, %247 : vector<8x128xf32>
    %274 = arith.mulf %258, %266 : vector<8x128xf32>
    %275 = arith.addf %273, %274 : vector<8x128xf32>
    %276 = math.tanh %275 : vector<8x128xf32>
    %277 = arith.mulf %272, %276 : vector<8x128xf32>
    %278 = arith.truncf %277 : vector<8x128xf32> to vector<8x128xbf16>
    %279 = arith.addi %5, %c6_i32 : i32
    %280 = vector.broadcast %279 : i32 to vector<8x1xi32>
    %281 = arith.cmpi slt, %280, %3 : vector<8x1xi32>
    %282 = vector.shape_cast %281 : vector<8x1xi1> to vector<8x1xi1>
    %283 = vector.broadcast %282 : vector<8x1xi1> to vector<8x128xi1>
    %284 = arith.select %283, %278, %244 : vector<8x128xi1>, vector<8x128xbf16>
    %285 = vector.shape_cast %281 : vector<8x1xi1> to vector<8x1xi1>
    %286 = vector.broadcast %285 : vector<8x1xi1> to vector<8x128xi1>
    %287 = arith.select %286, %275, %247 : vector<8x128xi1>, vector<8x128xf32>
    %c7_i32 = arith.constant 7 : i32
    %288 = arith.index_cast %c7_i32 : i32 to index
    %c0_50 = arith.constant 0 : index
    %c0_51 = arith.constant 0 : index
    %289 = vector.load %arg2[%288, %c0_50, %c0_51] : memref<8x8x512xf32, #tpu.memory_space<vmem>>, vector<1x8x512xf32>
    %290 = vector.shape_cast %289 : vector<1x8x512xf32> to vector<8x512xf32>
    %cst_52 = arith.constant dense<0.000000e+00> : vector<8x512xf32>
    %291 = tpu.matmul %284, %4, %cst_52 {dimension_numbers = #tpu.dot_dimension_numbers<[1], [0], [0], [1], [0, 0, 1, 1], [], []>} : vector<8x128xbf16>, vector<128x512xbf16>, vector<8x512xf32> -> vector<8x512xf32>
    %292 = arith.addf %290, %291 : vector<8x512xf32>
    %293 = vector.extract_strided_slice %292 {offsets = [0, 0], sizes = [8, 128], strides = [1, 1]} : vector<8x512xf32> to vector<8x128xf32>
    %294 = arith.negf %293 : vector<8x128xf32>
    %295 = math.exp %294 : vector<8x128xf32>
    %cst_53 = arith.constant 1.000000e+00 : f32
    %296 = vector.broadcast %cst_53 : f32 to vector<8x128xf32>
    %297 = arith.addf %296, %295 : vector<8x128xf32>
    %298 = arith.divf %296, %297 : vector<8x128xf32>
    %299 = vector.extract_strided_slice %292 {offsets = [0, 128], sizes = [8, 128], strides = [1, 1]} : vector<8x512xf32> to vector<8x128xf32>
    %300 = arith.negf %299 : vector<8x128xf32>
    %301 = math.exp %300 : vector<8x128xf32>
    %cst_54 = arith.constant 1.000000e+00 : f32
    %302 = vector.broadcast %cst_54 : f32 to vector<8x128xf32>
    %303 = arith.addf %302, %301 : vector<8x128xf32>
    %304 = arith.divf %302, %303 : vector<8x128xf32>
    %305 = vector.extract_strided_slice %292 {offsets = [0, 256], sizes = [8, 128], strides = [1, 1]} : vector<8x512xf32> to vector<8x128xf32>
    %306 = math.tanh %305 : vector<8x128xf32>
    %307 = vector.extract_strided_slice %292 {offsets = [0, 384], sizes = [8, 128], strides = [1, 1]} : vector<8x512xf32> to vector<8x128xf32>
    %308 = arith.negf %307 : vector<8x128xf32>
    %309 = math.exp %308 : vector<8x128xf32>
    %cst_55 = arith.constant 1.000000e+00 : f32
    %310 = vector.broadcast %cst_55 : f32 to vector<8x128xf32>
    %311 = arith.addf %310, %309 : vector<8x128xf32>
    %312 = arith.divf %310, %311 : vector<8x128xf32>
    %313 = arith.mulf %304, %287 : vector<8x128xf32>
    %314 = arith.mulf %298, %306 : vector<8x128xf32>
    %315 = arith.addf %313, %314 : vector<8x128xf32>
    %316 = math.tanh %315 : vector<8x128xf32>
    %317 = arith.mulf %312, %316 : vector<8x128xf32>
    %318 = arith.truncf %317 : vector<8x128xf32> to vector<8x128xbf16>
    %319 = arith.addi %5, %c7_i32 : i32
    %320 = vector.broadcast %319 : i32 to vector<8x1xi32>
    %321 = arith.cmpi slt, %320, %3 : vector<8x1xi32>
    %322 = vector.shape_cast %321 : vector<8x1xi1> to vector<8x1xi1>
    %323 = vector.broadcast %322 : vector<8x1xi1> to vector<8x128xi1>
    %324 = arith.select %323, %318, %284 : vector<8x128xi1>, vector<8x128xbf16>
    %325 = vector.shape_cast %321 : vector<8x1xi1> to vector<8x1xi1>
    %326 = vector.broadcast %325 : vector<8x1xi1> to vector<8x128xi1>
    %327 = arith.select %326, %315, %287 : vector<8x128xi1>, vector<8x128xf32>
    %c8_i32_56 = arith.constant 8 : i32
    %c0_57 = arith.constant 0 : index
    %c0_58 = arith.constant 0 : index
    %328 = vector.load %arg8[%c0_57, %c0_58] : memref<8x128xbf16, #tpu.memory_space<vmem>>, vector<8x128xbf16>
    tpu.vector_store %arg8[%c0_57, %c0_58], %324 {strides = array<i32>} : memref<8x128xbf16, #tpu.memory_space<vmem>>, vector<8x128xbf16>,
    %c0_59 = arith.constant 0 : index
    %c0_60 = arith.constant 0 : index
    %329 = vector.load %arg9[%c0_59, %c0_60] : memref<8x128xf32, #tpu.memory_space<vmem>>, vector<8x128xf32>
    tpu.vector_store %arg9[%c0_59, %c0_60], %327 {strides = array<i32>} : memref<8x128xf32, #tpu.memory_space<vmem>>, vector<8x128xf32>,
    %c2_i32_61 = arith.constant 2 : i32
    %330 = arith.cmpi eq, %arg1, %c2_i32_61 : i32
    %331 = arith.extui %330 : i1 to i32
    %c0_i32_62 = arith.constant 0 : i32
    %332 = arith.cmpi ne, %331, %c0_i32_62 : i32
    scf.if %332 {
      %c0_63 = arith.constant 0 : index
      %c0_64 = arith.constant 0 : index
      %333 = vector.load %arg5[%c0_63, %c0_64] : memref<128x128xbf16, #tpu.memory_space<vmem>>, vector<128x128xbf16>
      %cst_65 = arith.constant dense<0.000000e+00> : vector<8x128xf32>
      %334 = tpu.matmul %324, %333, %cst_65 {dimension_numbers = #tpu.dot_dimension_numbers<[1], [0], [0], [1], [0, 0, 1, 1], [], []>} : vector<8x128xbf16>, vector<128x128xbf16>, vector<8x128xf32> -> vector<8x128xf32>
      %c0_66 = arith.constant 0 : index
      %c0_67 = arith.constant 0 : index
      %335 = vector.load %arg6[%c0_66, %c0_67] : memref<1x128xf32, #tpu.memory_space<vmem>>, vector<1x128xf32>
      %336 = vector.broadcast %335 : vector<1x128xf32> to vector<8x128xf32>
      %337 = arith.addf %334, %336 : vector<8x128xf32>
      %cst_68 = arith.constant dense<0xFF800000> : vector<8xf32>
      %338 = vector.multi_reduction <maximumf>, %337, %cst_68 [1] : vector<8x128xf32> to vector<8xf32>
      %339 = vector.shape_cast %338 : vector<8xf32> to vector<8x1xf32>
      %340 = vector.broadcast %339 : vector<8x1xf32> to vector<8x128xf32>
      %341 = arith.subf %337, %340 : vector<8x128xf32>
      %342 = math.exp %341 : vector<8x128xf32>
      %cst_69 = arith.constant dense<0.000000e+00> : vector<8xf32>
      %343 = vector.multi_reduction <add>, %342, %cst_69 [1] : vector<8x128xf32> to vector<8xf32>
      %344 = vector.shape_cast %343 : vector<8xf32> to vector<8x1xf32>
      %345 = vector.broadcast %344 : vector<8x1xf32> to vector<8x128xf32>
      %346 = arith.divf %342, %345 : vector<8x128xf32>
      %c0_70 = arith.constant 0 : index
      %c0_71 = arith.constant 0 : index
      %347 = vector.load %arg7[%c0_70, %c0_71] : memref<8x128xf32, #tpu.memory_space<vmem>>, vector<8x128xf32>
      tpu.vector_store %arg7[%c0_70, %c0_71], %346 {strides = array<i32>} : memref<8x128xf32, #tpu.memory_space<vmem>>, vector<8x128xf32>,
    } else {
    }
    return
  }
  func.func @transform_0(%arg0: i32, %arg1: i32) -> (i32, i32, i32) {
    %c0_i32 = arith.constant 0 : i32
    %c0_i32_0 = arith.constant 0 : i32
    return %arg1, %arg0, %c0_i32 : i32, i32, i32
  }
  func.func @transform_1(%arg0: i32, %arg1: i32) -> (i32, i32) {
    %c0_i32 = arith.constant 0 : i32
    %c0_i32_0 = arith.constant 0 : i32
    return %arg0, %c0_i32 : i32, i32
  }
  func.func @transform_2(%arg0: i32, %arg1: i32) -> (i32, i32) {
    %c0_i32 = arith.constant 0 : i32
    %c0_i32_0 = arith.constant 0 : i32
    %c0_i32_1 = arith.constant 0 : i32
    return %c0_i32, %c0_i32_0 : i32, i32
  }
  func.func @transform_3(%arg0: i32, %arg1: i32) -> (i32, i32) {
    %c0_i32 = arith.constant 0 : i32
    %c0_i32_0 = arith.constant 0 : i32
    %c0_i32_1 = arith.constant 0 : i32
    return %c0_i32, %c0_i32_0 : i32, i32
  }
  func.func @transform_4(%arg0: i32, %arg1: i32) -> (i32, i32) {
    %c0_i32 = arith.constant 0 : i32
    %c0_i32_0 = arith.constant 0 : i32
    %c0_i32_1 = arith.constant 0 : i32
    return %c0_i32, %c0_i32_0 : i32, i32
  }
  func.func @transform_5(%arg0: i32, %arg1: i32) -> (i32, i32) {
    %c0_i32 = arith.constant 0 : i32
    %c0_i32_0 = arith.constant 0 : i32
    return %arg0, %c0_i32 : i32, i32
  }
}

</mosaic_0001>

<llo_original>
// kernel: tpu_custom_call.1
$region0: #{tpu_custom_call.1}
  #allocation0 [shape = 'u32[]', space=smem, size = 0x4, offset = 0x4, fixed_abs, tag = 'smem constant byte address 0x4 - core index']
  #allocation1 [shape = 'u32[144,128]{1,0:T(1,128)}', space=vmem, size = 0x12000, scoped, tag = 'internal scratch']
  #allocation2 [shape = 'bf16[8,128]{1,0:T(8,128)(2,1)}', space=vmem, size = 0x800, scoped, tag = 'scratch operand']
  #allocation3 [shape = 'f32[8,128]{1,0:T(8,128)}', space=vmem, size = 0x1000, scoped, tag = 'scratch operand']
  %s0 = inlined_call_operand.hbm [shape: f32[24,8,512], index: 0, kind: input, shape index: {}]
  %s1 = inlined_call_operand.vmem [shape: s32[8,1], index: 1, kind: input, shape index: {}]
  %s2 = inlined_call_operand.hbm [shape: bf16[128,512], index: 2, kind: input, shape index: {}]
  %s3 = inlined_call_operand.hbm [shape: bf16[128,128], index: 3, kind: input, shape index: {}]
  %s4 = inlined_call_operand.vmem [shape: f32[1,128], index: 4, kind: input, shape index: {}]
  %s5 = inlined_call_operand.hbm [shape: f32[8,128], index: 5, kind: output, shape index: {}]
  %s6 = sld [smem:[#allocation0]]
  $region73: #{tpu_custom_call.1} parent=0
    _
  %s8 = ssub.s32 1, %s6
  %s9 = scalar_select 0, %s8, %s6
  $region1: #{tpu_custom_call.1} parent=0
    #allocation4 [shape = 'u8[262144]{0}', space=vmem, size = 0x40000, scoped, tag = 'input window, operand 0']
    #allocation5 [shape = 's32[2]{0}', space=sflag, size = 0x8, scoped, tag = 'scoped memory for tpu_custom_call.1']
    #allocation6 [shape = 's32[2]{0}', space=sflag, size = 0x8, scoped, tag = 'scoped memory for tpu_custom_call.1']
    #allocation7 [shape = 'u8[131072]{0}', space=vmem, size = 0x20000, scoped, tag = 'input window, operand 2, single buffered']
    #allocation8 [shape = 's32[1]{0}', space=sflag, size = 0x4, scoped, tag = 'scoped memory for tpu_custom_call.1']
    #allocation9 [shape = 'u8[32768]{0}', space=vmem, size = 0x8000, scoped, tag = 'input window, operand 3, single buffered']
    #allocation10 [shape = 'u8[4096]{0}', space=vmem, size = 0x1000, scoped, tag = 'output window, operand 0, single buffered']
    %10 = vsyncpa [#allocation5], 0
    %s11 = scalar_lea.sflag [#allocation5], 1
    %12 = vsyncpa %s11, 0
    %13 = vsyncpa [#allocation8], 0
    %14 = vsyncpa [#allocation6], 0
    loop: start=0, step=1, limit=5
    $region2: #{tpu_custom_call.1} parent=1 // loop_pre_header
      _
    $region3: #{tpu_custom_call.1} parent=1 // loop_header
      %s16 = sphi 0, %s20
      %p17 = scmp.ge.s32.totalorder %s16, 5
      %s23 = sphi 0, %s35
      %s24 = sphi 0, %s31
      %s25 = sphi 0, %s23
      %s26 = sphi 0, %s24
      %s27 = sphi 0, %s25
      %s28 = sphi 0, %s26
      %s40 = sphi 0, %s42
      %s43 = sphi 0, %s40
      %s44 = sphi 0, %s43
      %s60 = sphi 0, %s44
      %s66 = sphi 0, %s68
      %s69 = sphi 0, %s66
      %s70 = sphi 0, %s69
      %s86 = sphi 0, %s70
      %s90 = sphi 0, %s90
      %s92 = sphi 0, %s90
      %s93 = sphi 0, %s92
      %s107 = sphi 0, %s93
      %s111 = sphi 0, %s111
      %s113 = sphi 0, %s111
      %s114 = sphi 0, %s113
      %s128 = sphi 0, %s114
      %s132 = sphi 0, %s132
      %s134 = sphi 0, %s132
      %s135 = sphi 0, %s134
      %s149 = sphi 0, %s135
      %s155 = sphi 0, %s157
      %s158 = sphi 0, %s155
      %s159 = sphi 0, %s158
      %s175 = sphi 0, %s159
    $region4: #{tpu_custom_call.1} parent=1 // loop_header_branch
      %19 = sbr.rel (%p17) target = $region8
    $region5: #{tpu_custom_call.1} parent=1 // loop_body
      %s21 = ssub.s32 %s16, 1
      %s22 = ssub.s32 %s16, 2
      %s29 = sadd.s32 1, %s24
      %p30 = scmp.ge.s32.totalorder %s29, 3
      %s31 = scalar_select %p30, 0, %s29
      %s32 = sadd.s32 1, %s23
      %s33 = scalar_select %p30, %s32, %s23
      %p34 = scmp.ge.s32.totalorder %s33, 1
      %s35 = scalar_select %p34, 0, %s33
      %s36 = ssub.s32 %s24, %s31
      %s37 = ssub.s32 %s23, %s35
      %s38 = sor.u32 %s36, %s37
      %p39 = scmp.eq.s32.totalorder %s38, 0
      %s41 = sadd.s32 %s40, 1
      %s42 = scalar_select %p39, %s40, %s41
      %p45 = pneg %p39
      %p46 = scmp.eq.s32.totalorder %s16, 2
      %p47 = por %p45, %p46
      %p48 = scmp.ne.s32.totalorder %s40, %s43
      %p49 = scmp.eq.s32.totalorder %s16, 0
      %p50 = por %p48, %p49
      %p51 = scmp.ne.s32.totalorder %s40, %s43
      %p52 = scmp.eq.s32.totalorder %s21, 2
      %p53 = por %p51, %p52
      %p54 = scmp.ne.s32.totalorder %s43, %s44
      %p55 = scmp.eq.s32.totalorder %s21, 0
      %p56 = por %p54, %p55
      %p57 = scmp.ne.s32.totalorder %s43, %s44
      %p58 = scmp.eq.s32.totalorder %s22, 2
      %p59 = por %p57, %p58
      %p61 = scmp.ne.s32.totalorder %s44, %s60
      %p62 = scmp.eq.s32.totalorder %s22, 0
      %p63 = por %p61, %p62
      %s64 = ssub.s32 %s23, %s35
      %p65 = scmp.eq.s32.totalorder %s64, 0
      %s67 = sadd.s32 %s66, 1
      %s68 = scalar_select %p65, %s66, %s67
      %p71 = pneg %p65
      %p72 = scmp.eq.s32.totalorder %s16, 2
      %p73 = por %p71, %p72
      %p74 = scmp.ne.s32.totalorder %s66, %s69
      %p75 = scmp.eq.s32.totalorder %s16, 0
      %p76 = por %p74, %p75
      %p77 = scmp.ne.s32.totalorder %s66, %s69
      %p78 = scmp.eq.s32.totalorder %s21, 2
      %p79 = por %p77, %p78
      %p80 = scmp.ne.s32.totalorder %s69, %s70
      %p81 = scmp.eq.s32.totalorder %s21, 0
      %p82 = por %p80, %p81
      %p83 = scmp.ne.s32.totalorder %s69, %s70
      %p84 = scmp.eq.s32.totalorder %s22, 2
      %p85 = por %p83, %p84
      %p87 = scmp.ne.s32.totalorder %s70, %s86
      %p88 = scmp.eq.s32.totalorder %s22, 0
      %p89 = por %p87, %p88
      %s91 = sadd.s32 %s90, 1
      %p94 = scmp.eq.s32.totalorder %s16, 2
      %p95 = scmp.ne.s32.totalorder %s90, %s92
      %p96 = scmp.eq.s32.totalorder %s16, 0
      %p97 = por %p95, %p96
      %p98 = scmp.ne.s32.totalorder %s90, %s92
      %p99 = scmp.eq.s32.totalorder %s21, 2
      %p100 = por %p98, %p99
      %p101 = scmp.ne.s32.totalorder %s92, %s93
      %p102 = scmp.eq.s32.totalorder %s21, 0
      %p103 = por %p101, %p102
      %p104 = scmp.ne.s32.totalorder %s92, %s93
      %p105 = scmp.eq.s32.totalorder %s22, 2
      %p106 = por %p104, %p105
      %p108 = scmp.ne.s32.totalorder %s93, %s107
      %p109 = scmp.eq.s32.totalorder %s22, 0
      %p110 = por %p108, %p109
      %s112 = sadd.s32 %s111, 1
      %p115 = scmp.eq.s32.totalorder %s16, 2
      %p116 = scmp.ne.s32.totalorder %s111, %s113
      %p117 = scmp.eq.s32.totalorder %s16, 0
      %p118 = por %p116, %p117
      %p119 = scmp.ne.s32.totalorder %s111, %s113
      %p120 = scmp.eq.s32.totalorder %s21, 2
      %p121 = por %p119, %p120
      %p122 = scmp.ne.s32.totalorder %s113, %s114
      %p123 = scmp.eq.s32.totalorder %s21, 0
      %p124 = por %p122, %p123
      %p125 = scmp.ne.s32.totalorder %s113, %s114
      %p126 = scmp.eq.s32.totalorder %s22, 2
      %p127 = por %p125, %p126
      %p129 = scmp.ne.s32.totalorder %s114, %s128
      %p130 = scmp.eq.s32.totalorder %s22, 0
      %p131 = por %p129, %p130
      %s133 = sadd.s32 %s132, 1
      %p136 = scmp.eq.s32.totalorder %s16, 2
      %p137 = scmp.ne.s32.totalorder %s132, %s134
      %p138 = scmp.eq.s32.totalorder %s16, 0
      %p139 = por %p137, %p138
      %p140 = scmp.ne.s32.totalorder %s132, %s134
      %p141 = scmp.eq.s32.totalorder %s21, 2
      %p142 = por %p140, %p141
      %p143 = scmp.ne.s32.totalorder %s134, %s135
      %p144 = scmp.eq.s32.totalorder %s21, 0
      %p145 = por %p143, %p144
      %p146 = scmp.ne.s32.totalorder %s134, %s135
      %p147 = scmp.eq.s32.totalorder %s22, 2
      %p148 = por %p146, %p147
      %p150 = scmp.ne.s32.totalorder %s135, %s149
      %p151 = scmp.eq.s32.totalorder %s22, 0
      %p152 = por %p150, %p151
      %s153 = ssub.s32 %s23, %s35
      %p154 = scmp.eq.s32.totalorder %s153, 0
      %s156 = sadd.s32 %s155, 1
      %s157 = scalar_select %p154, %s155, %s156
      %p160 = pneg %p154
      %p161 = scmp.eq.s32.totalorder %s16, 2
      %p162 = por %p160, %p161
      %p163 = scmp.ne.s32.totalorder %s155, %s158
      %p164 = scmp.eq.s32.totalorder %s16, 0
      %p165 = por %p163, %p164
      %p166 = scmp.ne.s32.totalorder %s155, %s158
      %p167 = scmp.eq.s32.totalorder %s21, 2
      %p168 = por %p166, %p167
      %p169 = scmp.ne.s32.totalorder %s158, %s159
      %p170 = scmp.eq.s32.totalorder %s21, 0
      %p171 = por %p169, %p170
      %p172 = scmp.ne.s32.totalorder %s158, %s159
      %p173 = scmp.eq.s32.totalorder %s22, 2
      %p174 = por %p172, %p173
      %p176 = scmp.ne.s32.totalorder %s159, %s175
      %p177 = scmp.eq.s32.totalorder %s22, 0
      %p178 = por %p176, %p177
      %p179 = scmp.le.s32.totalorder 1, %s16
      %p180 = scmp.lt.s32.totalorder %s16, 4
      %p181 = pnand %p179, %p180
      %p182 = pneg %p181
      // Predicated region
      $region9: #{tpu_custom_call.1} parent=5 // pred_check
        _
      $region10: #{tpu_custom_call.1} parent=5 // pred_check_branch
        %184 = sbr.rel (%p181) target = $region12
      $region11: #{tpu_custom_call.1} parent=5 // pred_region
        %s185 = ssub.s32 %s16, 1
        // Predicated region
        $region13: #{tpu_custom_call.1} parent=11 // pred_check
          %p186 = pneg %p82
        $region14: #{tpu_custom_call.1} parent=11 // pred_check_branch
          %188 = sbr.rel (%p186) target = $region16
        $region15: #{tpu_custom_call.1} parent=11 // pred_region
          %p189 = scmp.lt.s32.totalorder %s25, 0
          %s190 = scalar_select %p189, %s25, 0
          %s191 = smul.addr %s190, 8
          %s192 = scalar_lea.vmem %s1, %s191
        $region16: #{tpu_custom_call.1} parent=11 // pred_fallthru
          _
        // Predicated region
        $region17: #{tpu_custom_call.1} parent=11 // pred_check
          %p193 = pneg %p103
        $region18: #{tpu_custom_call.1} parent=11 // pred_check_branch
          %195 = sbr.rel (%p193) target = $region20
        $region19: #{tpu_custom_call.1} parent=11 // pred_region
          %s197 = ssub.s32 4096, 4096
          %198 = vsyncadd [#allocation8], %s197
          %s199 = sshll.u32 [#allocation7], 4
          %s200 = int_to_ptr.vmem [resolvable:$true] %s199
          %205 = dma.hbm_to_vmem [thread:$0]  %s2, 4096, %s200, [#allocation8], 256, 256, 16
        $region20: #{tpu_custom_call.1} parent=11 // pred_fallthru
          _
        // Predicated region
        $region21: #{tpu_custom_call.1} parent=11 // pred_check
          %p206 = pneg %p124
        $region22: #{tpu_custom_call.1} parent=11 // pred_check_branch
          %208 = sbr.rel (%p206) target = $region24
        $region23: #{tpu_custom_call.1} parent=11 // pred_region
          %s210 = ssub.s32 1024, 1024
          %211 = vsyncadd [#allocation8], %s210
          %s212 = sshll.u32 [#allocation9], 4
          %s213 = int_to_ptr.vmem [resolvable:$true] %s212
          %218 = dma.hbm_to_vmem [thread:$0]  %s3, 1024, %s213, [#allocation8], 64, 64, 4
        $region24: #{tpu_custom_call.1} parent=11 // pred_fallthru
          _
        // Predicated region
        $region25: #{tpu_custom_call.1} parent=11 // pred_check
          %p219 = pneg %p145
        $region26: #{tpu_custom_call.1} parent=11 // pred_check_branch
          %221 = sbr.rel (%p219) target = $region28
        $region27: #{tpu_custom_call.1} parent=11 // pred_region
          _
        $region28: #{tpu_custom_call.1} parent=11 // pred_fallthru
          _
      $region12: #{tpu_custom_call.1} parent=5 // pred_fallthru
        _
      %p222 = scmp.lt.s32.totalorder %s16, 3
      // Predicated region
      $region29: #{tpu_custom_call.1} parent=5 // pred_check
        %p223 = pneg %p222
      $region30: #{tpu_custom_call.1} parent=5 // pred_check_branch
        %225 = sbr.rel (%p223) target = $region32
      $region31: #{tpu_custom_call.1} parent=5 // pred_region
        // Predicated region
        $region33: #{tpu_custom_call.1} parent=31 // pred_check
          %p226 = pneg %p50
        $region34: #{tpu_custom_call.1} parent=31 // pred_check_branch
          %228 = sbr.rel (%p226) target = $region36
        $region35: #{tpu_custom_call.1} parent=31 // pred_region
          %s229 = sand.u32 %s40, 1
          %s230 = scalar_lea.sflag [#allocation5], %s229
          %s231 = sand.u32 %s40, 1
          %s232 = smul.addr %s231, 256
          %s233 = scalar_lea.vmem [#allocation4], %s232
          %s234 = smul.u32 8, %s24
          %s236 = ssub.s32 4096, 4096
          %237 = vsyncadd %s230, %s236
          %s238 = smul.addr %s23, 4
          %s239 = smul.addr %s234, 4
          %s240 = sadd.s32 %s238, %s239
          %s241 = smul.addr %s240, 128
          %s242 = scalar_lea.hbm %s0, %s241
          %s243 = sshll.u32 %s233, 4
          %s244 = int_to_ptr.vmem [resolvable:$true] %s243
          %249 = dma.hbm_to_vmem [thread:$0]  %s242, 4096, %s244, %s230, 512, 512, 32
        $region36: #{tpu_custom_call.1} parent=31 // pred_fallthru
          _
      $region32: #{tpu_custom_call.1} parent=5 // pred_fallthru
        _
      %p250 = scmp.le.s32.totalorder 1, %s16
      %p251 = scmp.lt.s32.totalorder %s16, 4
      %p252 = pnand %p250, %p251
      %p253 = pneg %p252
      // Predicated region
      $region37: #{tpu_custom_call.1} parent=5 // pred_check
        _
      $region38: #{tpu_custom_call.1} parent=5 // pred_check_branch
        %255 = sbr.rel (%p252) target = $region40
      $region39: #{tpu_custom_call.1} parent=5 // pred_region
        %s256 = ssub.s32 %s16, 1
        %s257 = sand.u32 %s43, 1
        %s258 = scalar_lea.sflag [#allocation5], %s257
        %s259 = sand.u32 %s43, 1
        %s260 = smul.addr %s259, 256
        %s261 = scalar_lea.vmem [#allocation4], %s260
        // Predicated region
        $region41: #{tpu_custom_call.1} parent=39 // pred_check
          %p262 = pneg %p56
        $region42: #{tpu_custom_call.1} parent=39 // pred_check_branch
          %264 = sbr.rel (%p262) target = $region44
        $region43: #{tpu_custom_call.1} parent=39 // pred_region
          %265 = dma.done %s258, 4096
        $region44: #{tpu_custom_call.1} parent=39 // pred_fallthru
          _
        // Predicated region
        $region45: #{tpu_custom_call.1} parent=39 // pred_check
          %p266 = pneg %p103
        $region46: #{tpu_custom_call.1} parent=39 // pred_check_branch
          %268 = sbr.rel (%p266) target = $region48
        $region47: #{tpu_custom_call.1} parent=39 // pred_region
          %269 = dma.done [#allocation8], 4096
        $region48: #{tpu_custom_call.1} parent=39 // pred_fallthru
          _
        // Predicated region
        $region49: #{tpu_custom_call.1} parent=39 // pred_check
          %p270 = pneg %p124
        $region50: #{tpu_custom_call.1} parent=39 // pred_check_branch
          %272 = sbr.rel (%p270) target = $region52
        $region51: #{tpu_custom_call.1} parent=39 // pred_region
          %273 = dma.done [#allocation8], 1024
        $region52: #{tpu_custom_call.1} parent=39 // pred_fallthru
          _
        %s274 = sand.u32 %s43, 1
        %s275 = scalar_lea.sflag [#allocation5], %s274
        %s276 = sand.u32 %s43, 1
        %s277 = smul.addr %s276, 256
        %s278 = scalar_lea.vmem [#allocation4], %s277
        %p279 = pneg %p56
        %p280 = pneg %p53
        %p281 = scmp.lt.s32.totalorder %s25, 0
        %s282 = scalar_select %p281, %s25, 0
        %s283 = smul.addr %s282, 8
        %s284 = scalar_lea.vmem %s1, %s283
        %p285 = pneg %p82
        %p286 = pneg %p79
        %p287 = pneg %p103
        %p288 = pneg %p100
        %p289 = pneg %p124
        %p290 = pneg %p121
        %p291 = pneg %p145
        %p292 = pneg %p142
        %p293 = pneg %p171
        %p294 = pneg %p168
        %s295 = smul.u32 8, %s26
        %p296 = scmp.lt.s32.totalorder %s25, 0
        %s297 = scalar_select %p296, %s25, 0
        %s298 = smul.addr %s297, 8
        %s299 = scalar_lea.vmem %s1, %s298
        %p301 = scmp.eq.s32.totalorder %s26, 0
        // Predicated region
        $region53: #{tpu_custom_call.1} parent=39 // pred_check
          %p302 = pneg %p301
        $region54: #{tpu_custom_call.1} parent=39 // pred_check_branch
          %304 = sbr.rel (%p302) target = $region56
        $region55: #{tpu_custom_call.1} parent=39 // pred_region
          %305 = vst [vmem:[#allocation2] sm:$0xf] 0
          %306 = vst [vmem:[#allocation3] sm:$0xff] 0.0
        $region56: #{tpu_custom_call.1} parent=39 // pred_fallthru
          _
        %v307 = vld [vmem:[%s299] sm:$0xff]
        %v308 = vld [vmem:[#allocation7] sm:$0xff]
        %v309 = vld [vmem:[#allocation7 + $0x8] sm:$0xff]
        %v310 = vld [vmem:[#allocation7 + $0x10] sm:$0xff]
        %v311 = vld [vmem:[#allocation7 + $0x18] sm:$0xff]
        %v312 = vld [vmem:[#allocation7 + $0x20] sm:$0xff]
        %v313 = vld [vmem:[#allocation7 + $0x28] sm:$0xff]
        %v314 = vld [vmem:[#allocation7 + $0x30] sm:$0xff]
        %v315 = vld [vmem:[#allocation7 + $0x38] sm:$0xff]
        %v316 = vld [vmem:[#allocation7 + $0x40] sm:$0xff]
        %v317 = vld [vmem:[#allocation7 + $0x48] sm:$0xff]
        %v318 = vld [vmem:[#allocation7 + $0x50] sm:$0xff]
        %v319 = vld [vmem:[#allocation7 + $0x58] sm:$0xff]
        %v320 = vld [vmem:[#allocation7 + $0x60] sm:$0xff]
        %v321 = vld [vmem:[#allocation7 + $0x68] sm:$0xff]
        %v322 = vld [vmem:[#allocation7 + $0x70] sm:$0xff]
        %v323 = vld [vmem:[#allocation7 + $0x78] sm:$0xff]
        %v324 = vld [vmem:[#allocation7 + $0x80] sm:$0xff]
        %v325 = vld [vmem:[#allocation7 + $0x88] sm:$0xff]
        %v326 = vld [vmem:[#allocation7 + $0x90] sm:$0xff]
        %v327 = vld [vmem:[#allocation7 + $0x98] sm:$0xff]
        %v328 = vld [vmem:[#allocation7 + $0xa0] sm:$0xff]
        %v329 = vld [vmem:[#allocation7 + $0xa8] sm:$0xff]
        %v330 = vld [vmem:[#allocation7 + $0xb0] sm:$0xff]
        %v331 = vld [vmem:[#allocation7 + $0xb8] sm:$0xff]
        %v332 = vld [vmem:[#allocation7 + $0xc0] sm:$0xff]
        %v333 = vld [vmem:[#allocation7 + $0xc8] sm:$0xff]
        %v334 = vld [vmem:[#allocation7 + $0xd0] sm:$0xff]
        %v335 = vld [vmem:[#allocation7 + $0xd8] sm:$0xff]
        %v336 = vld [vmem:[#allocation7 + $0xe0] sm:$0xff]
        %v337 = vld [vmem:[#allocation7 + $0xe8] sm:$0xff]
        %v338 = vld [vmem:[#allocation7 + $0xf0] sm:$0xff]
        %v339 = vld [vmem:[#allocation7 + $0xf8] sm:$0xff]
        %s340 = smul.u32 %s26, 8
        %v341 = vld [vmem:[#allocation2] sm:$0xf]
        %v342 = vld [vmem:[#allocation3] sm:$0xff]
        %v343 = vld [vmem:[%s261] sm:$0xff]
        %v344 = vld [vmem:[%s261 + $0x8] sm:$0xff]
        %v345 = vld [vmem:[%s261 + $0x10] sm:$0xff]
        %v346 = vld [vmem:[%s261 + $0x18] sm:$0xff]
        %v379 = vunpack.c.l.b16 %v308
        %v380 = vunpack.c.h.b16 %v308
        %v381 = vunpack.c.l.b16 %v309
        %v382 = vunpack.c.h.b16 %v309
        %v383 = vunpack.c.l.b16 %v310
        %v384 = vunpack.c.h.b16 %v310
        %v385 = vunpack.c.l.b16 %v311
        %v386 = vunpack.c.h.b16 %v311
        %v387 = vunpack.c.l.b16 %v312
        %v388 = vunpack.c.h.b16 %v312
        %v389 = vunpack.c.l.b16 %v313
        %v390 = vunpack.c.h.b16 %v313
        %v391 = vunpack.c.l.b16 %v314
        %v392 = vunpack.c.h.b16 %v314
        %v393 = vunpack.c.l.b16 %v315
        %v394 = vunpack.c.h.b16 %v315
        %v395 = vunpack.c.l.b16 %v316
        %v396 = vunpack.c.h.b16 %v316
        %v397 = vunpack.c.l.b16 %v317
        %v398 = vunpack.c.h.b16 %v317
        %v399 = vunpack.c.l.b16 %v318
        %v400 = vunpack.c.h.b16 %v318
        %v401 = vunpack.c.l.b16 %v319
        %v402 = vunpack.c.h.b16 %v319
        %v403 = vunpack.c.l.b16 %v320
        %v404 = vunpack.c.h.b16 %v320
        %v405 = vunpack.c.l.b16 %v321
        %v406 = vunpack.c.h.b16 %v321
        %v407 = vunpack.c.l.b16 %v322
        %v408 = vunpack.c.h.b16 %v322
        %v409 = vunpack.c.l.b16 %v323
        %v410 = vunpack.c.h.b16 %v323
        %v411 = vunpack.c.l.b16 %v324
        %v412 = vunpack.c.h.b16 %v324
        %v413 = vunpack.c.l.b16 %v325
        %v414 = vunpack.c.h.b16 %v325
        %v415 = vunpack.c.l.b16 %v326
        %v416 = vunpack.c.h.b16 %v326
        %v417 = vunpack.c.l.b16 %v327
        %v418 = vunpack.c.h.b16 %v327
        %v419 = vunpack.c.l.b16 %v328
        %v420 = vunpack.c.h.b16 %v328
        %v421 = vunpack.c.l.b16 %v329
        %v422 = vunpack.c.h.b16 %v329
        %v423 = vunpack.c.l.b16 %v330
        %v424 = vunpack.c.h.b16 %v330
        %v425 = vunpack.c.l.b16 %v331
        %v426 = vunpack.c.h.b16 %v331
        %v427 = vunpack.c.l.b16 %v332
        %v428 = vunpack.c.h.b16 %v332
        %v429 = vunpack.c.l.b16 %v333
        %v430 = vunpack.c.h.b16 %v333
        %v431 = vunpack.c.l.b16 %v334
        %v432 = vunpack.c.h.b16 %v334
        %v433 = vunpack.c.l.b16 %v335
        %v434 = vunpack.c.h.b16 %v335
        %v435 = vunpack.c.l.b16 %v336
        %v436 = vunpack.c.h.b16 %v336
        %v437 = vunpack.c.l.b16 %v337
        %v438 = vunpack.c.h.b16 %v337
        %v439 = vunpack.c.l.b16 %v338
        %v440 = vunpack.c.h.b16 %v338
        %v441 = vunpack.c.l.b16 %v339
        %v442 = vunpack.c.h.b16 %v339
        %v443 = vpack.c.b16 %v383, %v379
        %v444 = vpack.c.b16 %v384, %v380
        %v445 = vpack.c.b16 %v385, %v381
        %v446 = vpack.c.b16 %v386, %v382
        %v447 = vpack.c.b16 %v391, %v387
        %v448 = vpack.c.b16 %v392, %v388
        %v449 = vpack.c.b16 %v393, %v389
        %v450 = vpack.c.b16 %v394, %v390
        %v451 = vpack.c.b16 %v399, %v395
        %v452 = vpack.c.b16 %v400, %v396
        %v453 = vpack.c.b16 %v401, %v397
        %v454 = vpack.c.b16 %v402, %v398
        %v455 = vpack.c.b16 %v407, %v403
        %v456 = vpack.c.b16 %v408, %v404
        %v457 = vpack.c.b16 %v409, %v405
        %v458 = vpack.c.b16 %v410, %v406
        %v459 = vpack.c.b16 %v415, %v411
        %v460 = vpack.c.b16 %v416, %v412
        %v461 = vpack.c.b16 %v417, %v413
        %v462 = vpack.c.b16 %v418, %v414
        %v463 = vpack.c.b16 %v423, %v419
        %v464 = vpack.c.b16 %v424, %v420
        %v465 = vpack.c.b16 %v425, %v421
        %v466 = vpack.c.b16 %v426, %v422
        %v467 = vpack.c.b16 %v431, %v427
        %v468 = vpack.c.b16 %v432, %v428
        %v469 = vpack.c.b16 %v433, %v429
        %v470 = vpack.c.b16 %v434, %v430
        %v471 = vpack.c.b16 %v439, %v435
        %v472 = vpack.c.b16 %v440, %v436
        %v473 = vpack.c.b16 %v441, %v437
        %v474 = vpack.c.b16 %v442, %v438
        %507 = vmatprep.subr.bf16.mxu0 %v472
        %508 = vmatpush1.bf16.msra.mxu0 %v471
        %509 = vmatprep.subr.bf16.mxu0 %v468
        %510 = vmatpush1.bf16.msra.mxu0 %v467
        %511 = vmatprep.subr.bf16.mxu0 %v464
        %512 = vmatpush1.bf16.msra.mxu0 %v463
        %513 = vmatprep.subr.bf16.mxu0 %v460
        %514 = vmatpush1.bf16.msra.mxu0 %v459
        %515 = vmatprep.subr.bf16.mxu0 %v456
        %516 = vmatpush1.bf16.msra.mxu0 %v455
        %517 = vmatprep.subr.bf16.mxu0 %v452
        %518 = vmatpush1.bf16.msra.mxu0 %v451
        %519 = vmatprep.subr.bf16.mxu0 %v448
        %520 = vmatpush1.bf16.msra.mxu0 %v447
        %521 = vmatprep.subr.bf16.mxu0 %v444
        %522 = vmatpush1.bf16.msra.mxu0 %v443
        %523 = vmatprep.subr.bf16.mxu0 0
        %524 = vmatpush2.bf16.msra.mxu0 0
        %525 = vmatprep.subr.bf16.mxu0 0
        %526 = vmatpush2.bf16.msra.mxu0 0
        %527 = vmatprep.subr.bf16.mxu0 0
        %528 = vmatpush2.bf16.msra.mxu0 0
        %529 = vmatprep.subr.bf16.mxu0 0
        %530 = vmatpush2.bf16.msra.mxu0 0
        %531 = vmatprep.subr.bf16.mxu0 0
        %532 = vmatpush2.bf16.msra.mxu0 0
        %533 = vmatprep.subr.bf16.mxu0 0
        %534 = vmatpush2.bf16.msra.mxu0 0
        %535 = vmatprep.subr.bf16.mxu0 0
        %536 = vmatpush2.bf16.msra.mxu0 0
        %537 = vmatprep.subr.bf16.mxu0 0
        %538 = vmatpush2.bf16.msra.mxu0 0
        %539 = vmatprep.mubr.bf16.mxu0 0
        %540 = vmatmul.mubr.bf16.gmra.mxu0 %v341
        %v541 = vpop.f32.mrf.mxu0
        %v542 = vadd.f32 0.0, %v541
        %v543 = vpop.f32.mrf.mxu0
        %v544 = vadd.f32 0.0, %v543
        %v545 = vpop.f32.mrf.mxu0
        %v546 = vpop.f32.mrf.mxu0
        %547 = vdwg.mxu0
        %548 = vmatprep.subr.bf16.mxu0 %v474
        %549 = vmatpush1.bf16.msra.mxu0 %v473
        %550 = vmatprep.subr.bf16.mxu0 %v470
        %551 = vmatpush1.bf16.msra.mxu0 %v469
        %552 = vmatprep.subr.bf16.mxu0 %v466
        %553 = vmatpush1.bf16.msra.mxu0 %v465
        %554 = vmatprep.subr.bf16.mxu0 %v462
        %555 = vmatpush1.bf16.msra.mxu0 %v461
        %556 = vmatprep.subr.bf16.mxu0 %v458
        %557 = vmatpush1.bf16.msra.mxu0 %v457
        %558 = vmatprep.subr.bf16.mxu0 %v454
        %559 = vmatpush1.bf16.msra.mxu0 %v453
        %560 = vmatprep.subr.bf16.mxu0 %v450
        %561 = vmatpush1.bf16.msra.mxu0 %v449
        %562 = vmatprep.subr.bf16.mxu0 %v446
        %563 = vmatpush1.bf16.msra.mxu0 %v445
        %564 = vmatprep.subr.bf16.mxu0 0
        %565 = vmatpush2.bf16.msra.mxu0 0
        %566 = vmatprep.subr.bf16.mxu0 0
        %567 = vmatpush2.bf16.msra.mxu0 0
        %568 = vmatprep.subr.bf16.mxu0 0
        %569 = vmatpush2.bf16.msra.mxu0 0
        %570 = vmatprep.subr.bf16.mxu0 0
        %571 = vmatpush2.bf16.msra.mxu0 0
        %572 = vmatprep.subr.bf16.mxu0 0
        %573 = vmatpush2.bf16.msra.mxu0 0
        %574 = vmatprep.subr.bf16.mxu0 0
        %575 = vmatpush2.bf16.msra.mxu0 0
        %576 = vmatprep.subr.bf16.mxu0 0
        %577 = vmatpush2.bf16.msra.mxu0 0
        %578 = vmatprep.subr.bf16.mxu0 0
        %579 = vmatpush2.bf16.msra.mxu0 0
        %580 = vmatprep.mubr.bf16.mxu0 0
        %581 = vmatmul.mubr.bf16.gmra.mxu0 %v341
        %v582 = vpop.f32.mrf.mxu0
        %v583 = vadd.f32 0.0, %v582
        %v584 = vpop.f32.mrf.mxu0
        %v585 = vadd.f32 0.0, %v584
        %v586 = vpop.f32.mrf.mxu0
        %v587 = vpop.f32.mrf.mxu0
        %588 = vdwg.mxu0
        %v589 = vadd.f32 %v343, %v542
        %v590 = vadd.f32 %v344, %v544
        %v591 = vadd.f32 %v345, %v583
        %v592 = vadd.f32 %v346, %v585
        %v593 = vxor.u32 %v589, 2147483648
        %v594 = vmul.f32 %v593, 1.442695
        %v595 = vpow.pop %v594
        %v596 = vadd.f32 %v595, 1.0
        %v597 = vrcp.pop %v596
        %v598 = vmul.f32 1.0, %v597
        %v599 = vxor.u32 %v590, 2147483648
        %v600 = vmul.f32 %v599, 1.442695
        %v601 = vpow.pop %v600
        %v602 = vadd.f32 %v601, 1.0
        %v603 = vrcp.pop %v602
        %v604 = vmul.f32 1.0, %v603
        %v605 = vtanh.pop %v591
        %v606 = vxor.u32 %v592, 2147483648
        %v607 = vmul.f32 %v606, 1.442695
        %v608 = vpow.pop %v607
        %v609 = vadd.f32 %v608, 1.0
        %v610 = vrcp.pop %v609
        %v611 = vmul.f32 1.0, %v610
        %v612 = vmul.f32 %v604, %v342
        %v613 = vmul.f32 %v598, %v605
        %v614 = vadd.f32 %v612, %v613
        %v615 = vtanh.pop %v614
        %v616 = vmul.f32 %v611, %v615
        %v617 = vpack.c.bf16 %v616, %v616
        %v618 = vstv %s340
        %vm619 = vcmp.lt.s32.totalorder %v618, %v307
        %v620 = vsel %vm619, 1, 0
        %621 = vset.pattern.permute.xlu0 0
        %622 = vperm.xlu0 %621, %v620
        %v623 = vpop.permute.xlu0 %622
        %vm624 = vcmp.eq.s32.totalorder %v623, 1
        %vm625 = vmpackc.low %vm624, %vm624
        %v626 = vsel %vm625, %v617, %v341
        %v627 = vsel %vm624, %v614, %v342
        %s628 = scalar_lea.vmem %s261, 32 [#allocation4]
        %v629 = vld [vmem:[%s628] sm:$0xff]
        %v630 = vld [vmem:[%s628 + $0x8] sm:$0xff]
        %v631 = vld [vmem:[%s628 + $0x10] sm:$0xff]
        %v632 = vld [vmem:[%s628 + $0x18] sm:$0xff]
        %633 = vmatprep.subr.bf16.mxu0 %v472
        %634 = vmatpush1.bf16.msra.mxu0 %v471
        %635 = vmatprep.subr.bf16.mxu0 %v468
        %636 = vmatpush1.bf16.msra.mxu0 %v467
        %637 = vmatprep.subr.bf16.mxu0 %v464
        %638 = vmatpush1.bf16.msra.mxu0 %v463
        %639 = vmatprep.subr.bf16.mxu0 %v460
        %640 = vmatpush1.bf16.msra.mxu0 %v459
        %641 = vmatprep.subr.bf16.mxu0 %v456
        %642 = vmatpush1.bf16.msra.mxu0 %v455
        %643 = vmatprep.subr.bf16.mxu0 %v452
        %644 = vmatpush1.bf16.msra.mxu0 %v451
        %645 = vmatprep.subr.bf16.mxu0 %v448
        %646 = vmatpush1.bf16.msra.mxu0 %v447
        %647 = vmatprep.subr.bf16.mxu0 %v444
        %648 = vmatpush1.bf16.msra.mxu0 %v443
        %649 = vmatprep.subr.bf16.mxu0 0
        %650 = vmatpush2.bf16.msra.mxu0 0
        %651 = vmatprep.subr.bf16.mxu0 0
        %652 = vmatpush2.bf16.msra.mxu0 0
        %653 = vmatprep.subr.bf16.mxu0 0
        %654 = vmatpush2.bf16.msra.mxu0 0
        %655 = vmatprep.subr.bf16.mxu0 0
        %656 = vmatpush2.bf16.msra.mxu0 0
        %657 = vmatprep.subr.bf16.mxu0 0
        %658 = vmatpush2.bf16.msra.mxu0 0
        %659 = vmatprep.subr.bf16.mxu0 0
        %660 = vmatpush2.bf16.msra.mxu0 0
        %661 = vmatprep.subr.bf16.mxu0 0
        %662 = vmatpush2.bf16.msra.mxu0 0
        %663 = vmatprep.subr.bf16.mxu0 0
        %664 = vmatpush2.bf16.msra.mxu0 0
        %665 = vmatprep.mubr.bf16.mxu0 0
        %666 = vmatmul.mubr.bf16.gmra.mxu0 %v626
        %v667 = vpop.f32.mrf.mxu0
        %v668 = vadd.f32 0.0, %v667
        %v669 = vpop.f32.mrf.mxu0
        %v670 = vadd.f32 0.0, %v669
        %v671 = vpop.f32.mrf.mxu0
        %v672 = vpop.f32.mrf.mxu0
        %673 = vdwg.mxu0
        %674 = vmatprep.subr.bf16.mxu0 %v474
        %675 = vmatpush1.bf16.msra.mxu0 %v473
        %676 = vmatprep.subr.bf16.mxu0 %v470
        %677 = vmatpush1.bf16.msra.mxu0 %v469
        %678 = vmatprep.subr.bf16.mxu0 %v466
        %679 = vmatpush1.bf16.msra.mxu0 %v465
        %680 = vmatprep.subr.bf16.mxu0 %v462
        %681 = vmatpush1.bf16.msra.mxu0 %v461
        %682 = vmatprep.subr.bf16.mxu0 %v458
        %683 = vmatpush1.bf16.msra.mxu0 %v457
        %684 = vmatprep.subr.bf16.mxu0 %v454
        %685 = vmatpush1.bf16.msra.mxu0 %v453
        %686 = vmatprep.subr.bf16.mxu0 %v450
        %687 = vmatpush1.bf16.msra.mxu0 %v449
        %688 = vmatprep.subr.bf16.mxu0 %v446
        %689 = vmatpush1.bf16.msra.mxu0 %v445
        %690 = vmatprep.subr.bf16.mxu0 0
        %691 = vmatpush2.bf16.msra.mxu0 0
        %692 = vmatprep.subr.bf16.mxu0 0
        %693 = vmatpush2.bf16.msra.mxu0 0
        %694 = vmatprep.subr.bf16.mxu0 0
        %695 = vmatpush2.bf16.msra.mxu0 0
        %696 = vmatprep.subr.bf16.mxu0 0
        %697 = vmatpush2.bf16.msra.mxu0 0
        %698 = vmatprep.subr.bf16.mxu0 0
        %699 = vmatpush2.bf16.msra.mxu0 0
        %700 = vmatprep.subr.bf16.mxu0 0
        %701 = vmatpush2.bf16.msra.mxu0 0
        %702 = vmatprep.subr.bf16.mxu0 0
        %703 = vmatpush2.bf16.msra.mxu0 0
        %704 = vmatprep.subr.bf16.mxu0 0
        %705 = vmatpush2.bf16.msra.mxu0 0
        %706 = vmatprep.mubr.bf16.mxu0 0
        %707 = vmatmul.mubr.bf16.gmra.mxu0 %v626
        %v708 = vpop.f32.mrf.mxu0
        %v709 = vadd.f32 0.0, %v708
        %v710 = vpop.f32.mrf.mxu0
        %v711 = vadd.f32 0.0, %v710
        %v712 = vpop.f32.mrf.mxu0
        %v713 = vpop.f32.mrf.mxu0
        %714 = vdwg.mxu0
        %v715 = vadd.f32 %v629, %v668
        %v716 = vadd.f32 %v630, %v670
        %v717 = vadd.f32 %v631, %v709
        %v718 = vadd.f32 %v632, %v711
        %v719 = vxor.u32 %v715, 2147483648
        %v720 = vmul.f32 %v719, 1.442695
        %v721 = vpow.pop %v720
        %v722 = vadd.f32 %v721, 1.0
        %v723 = vrcp.pop %v722
        %v724 = vmul.f32 1.0, %v723
        %v725 = vxor.u32 %v716, 2147483648
        %v726 = vmul.f32 %v725, 1.442695
        %v727 = vpow.pop %v726
        %v728 = vadd.f32 %v727, 1.0
        %v729 = vrcp.pop %v728
        %v730 = vmul.f32 1.0, %v729
        %v731 = vtanh.pop %v717
        %v732 = vxor.u32 %v718, 2147483648
        %v733 = vmul.f32 %v732, 1.442695
        %v734 = vpow.pop %v733
        %v735 = vadd.f32 %v734, 1.0
        %v736 = vrcp.pop %v735
        %v737 = vmul.f32 1.0, %v736
        %v738 = vmul.f32 %v730, %v627
        %v739 = vmul.f32 %v724, %v731
        %v740 = vadd.f32 %v738, %v739
        %v741 = vtanh.pop %v740
        %v742 = vmul.f32 %v737, %v741
        %v743 = vpack.c.bf16 %v742, %v742
        %s744 = sadd.s32 %s340, 1
        %v745 = vstv %s744
        %vm746 = vcmp.lt.s32.totalorder %v745, %v307
        %v747 = vsel %vm746, 1, 0
        %748 = vset.pattern.permute.xlu0 0
        %749 = vperm.xlu0 %748, %v747
        %v750 = vpop.permute.xlu0 %749
        %vm751 = vcmp.eq.s32.totalorder %v750, 1
        %vm752 = vmpackc.low %vm751, %vm751
        %v753 = vsel %vm752, %v743, %v626
        %v754 = vsel %vm751, %v740, %v627
        %s755 = scalar_lea.vmem %s261, 64 [#allocation4]
        %v756 = vld [vmem:[%s755] sm:$0xff]
        %v757 = vld [vmem:[%s755 + $0x8] sm:$0xff]
        %v758 = vld [vmem:[%s755 + $0x10] sm:$0xff]
        %v759 = vld [vmem:[%s755 + $0x18] sm:$0xff]
        %760 = vmatprep.subr.bf16.mxu0 %v472
        %761 = vmatpush1.bf16.msra.mxu0 %v471
        %762 = vmatprep.subr.bf16.mxu0 %v468
        %763 = vmatpush1.bf16.msra.mxu0 %v467
        %764 = vmatprep.subr.bf16.mxu0 %v464
        %765 = vmatpush1.bf16.msra.mxu0 %v463
        %766 = vmatprep.subr.bf16.mxu0 %v460
        %767 = vmatpush1.bf16.msra.mxu0 %v459
        %768 = vmatprep.subr.bf16.mxu0 %v456
        %769 = vmatpush1.bf16.msra.mxu0 %v455
        %770 = vmatprep.subr.bf16.mxu0 %v452
        %771 = vmatpush1.bf16.msra.mxu0 %v451
        %772 = vmatprep.subr.bf16.mxu0 %v448
        %773 = vmatpush1.bf16.msra.mxu0 %v447
        %774 = vmatprep.subr.bf16.mxu0 %v444
        %775 = vmatpush1.bf16.msra.mxu0 %v443
        %776 = vmatprep.subr.bf16.mxu0 0
        %777 = vmatpush2.bf16.msra.mxu0 0
        %778 = vmatprep.subr.bf16.mxu0 0
        %779 = vmatpush2.bf16.msra.mxu0 0
        %780 = vmatprep.subr.bf16.mxu0 0
        %781 = vmatpush2.bf16.msra.mxu0 0
        %782 = vmatprep.subr.bf16.mxu0 0
        %783 = vmatpush2.bf16.msra.mxu0 0
        %784 = vmatprep.subr.bf16.mxu0 0
        %785 = vmatpush2.bf16.msra.mxu0 0
        %786 = vmatprep.subr.bf16.mxu0 0
        %787 = vmatpush2.bf16.msra.mxu0 0
        %788 = vmatprep.subr.bf16.mxu0 0
        %789 = vmatpush2.bf16.msra.mxu0 0
        %790 = vmatprep.subr.bf16.mxu0 0
        %791 = vmatpush2.bf16.msra.mxu0 0
        %792 = vmatprep.mubr.bf16.mxu0 0
        %793 = vmatmul.mubr.bf16.gmra.mxu0 %v753
        %v794 = vpop.f32.mrf.mxu0
        %v795 = vadd.f32 0.0, %v794
        %v796 = vpop.f32.mrf.mxu0
        %v797 = vadd.f32 0.0, %v796
        %v798 = vpop.f32.mrf.mxu0
        %v799 = vpop.f32.mrf.mxu0
        %800 = vdwg.mxu0
        %801 = vmatprep.subr.bf16.mxu0 %v474
        %802 = vmatpush1.bf16.msra.mxu0 %v473
        %803 = vmatprep.subr.bf16.mxu0 %v470
        %804 = vmatpush1.bf16.msra.mxu0 %v469
        %805 = vmatprep.subr.bf16.mxu0 %v466
        %806 = vmatpush1.bf16.msra.mxu0 %v465
        %807 = vmatprep.subr.bf16.mxu0 %v462
        %808 = vmatpush1.bf16.msra.mxu0 %v461
        %809 = vmatprep.subr.bf16.mxu0 %v458
        %810 = vmatpush1.bf16.msra.mxu0 %v457
        %811 = vmatprep.subr.bf16.mxu0 %v454
        %812 = vmatpush1.bf16.msra.mxu0 %v453
        %813 = vmatprep.subr.bf16.mxu0 %v450
        %814 = vmatpush1.bf16.msra.mxu0 %v449
        %815 = vmatprep.subr.bf16.mxu0 %v446
        %816 = vmatpush1.bf16.msra.mxu0 %v445
        %817 = vmatprep.subr.bf16.mxu0 0
        %818 = vmatpush2.bf16.msra.mxu0 0
        %819 = vmatprep.subr.bf16.mxu0 0
        %820 = vmatpush2.bf16.msra.mxu0 0
        %821 = vmatprep.subr.bf16.mxu0 0
        %822 = vmatpush2.bf16.msra.mxu0 0
        %823 = vmatprep.subr.bf16.mxu0 0
        %824 = vmatpush2.bf16.msra.mxu0 0
        %825 = vmatprep.subr.bf16.mxu0 0
        %826 = vmatpush2.bf16.msra.mxu0 0
        %827 = vmatprep.subr.bf16.mxu0 0
        %828 = vmatpush2.bf16.msra.mxu0 0
        %829 = vmatprep.subr.bf16.mxu0 0
        %830 = vmatpush2.bf16.msra.mxu0 0
        %831 = vmatprep.subr.bf16.mxu0 0
        %832 = vmatpush2.bf16.msra.mxu0 0
        %833 = vmatprep.mubr.bf16.mxu0 0
        %834 = vmatmul.mubr.bf16.gmra.mxu0 %v753
        %v835 = vpop.f32.mrf.mxu0
        %v836 = vadd.f32 0.0, %v835
        %v837 = vpop.f32.mrf.mxu0
        %v838 = vadd.f32 0.0, %v837
        %v839 = vpop.f32.mrf.mxu0
        %v840 = vpop.f32.mrf.mxu0
        %841 = vdwg.mxu0
        %v842 = vadd.f32 %v756, %v795
        %v843 = vadd.f32 %v757, %v797
        %v844 = vadd.f32 %v758, %v836
        %v845 = vadd.f32 %v759, %v838
        %v846 = vxor.u32 %v842, 2147483648
        %v847 = vmul.f32 %v846, 1.442695
        %v848 = vpow.pop %v847
        %v849 = vadd.f32 %v848, 1.0
        %v850 = vrcp.pop %v849
        %v851 = vmul.f32 1.0, %v850
        %v852 = vxor.u32 %v843, 2147483648
        %v853 = vmul.f32 %v852, 1.442695
        %v854 = vpow.pop %v853
        %v855 = vadd.f32 %v854, 1.0
        %v856 = vrcp.pop %v855
        %v857 = vmul.f32 1.0, %v856
        %v858 = vtanh.pop %v844
        %v859 = vxor.u32 %v845, 2147483648
        %v860 = vmul.f32 %v859, 1.442695
        %v861 = vpow.pop %v860
        %v862 = vadd.f32 %v861, 1.0
        %v863 = vrcp.pop %v862
        %v864 = vmul.f32 1.0, %v863
        %v865 = vmul.f32 %v857, %v754
        %v866 = vmul.f32 %v851, %v858
        %v867 = vadd.f32 %v865, %v866
        %v868 = vtanh.pop %v867
        %v869 = vmul.f32 %v864, %v868
        %v870 = vpack.c.bf16 %v869, %v869
        %s871 = sadd.s32 %s340, 2
        %v872 = vstv %s871
        %vm873 = vcmp.lt.s32.totalorder %v872, %v307
        %v874 = vsel %vm873, 1, 0
        %875 = vset.pattern.permute.xlu0 0
        %876 = vperm.xlu0 %875, %v874
        %v877 = vpop.permute.xlu0 %876
        %vm878 = vcmp.eq.s32.totalorder %v877, 1
        %vm879 = vmpackc.low %vm878, %vm878
        %v880 = vsel %vm879, %v870, %v753
        %v881 = vsel %vm878, %v867, %v754
        %s882 = scalar_lea.vmem %s261, 96 [#allocation4]
        %v883 = vld [vmem:[%s882] sm:$0xff]
        %v884 = vld [vmem:[%s882 + $0x8] sm:$0xff]
        %v885 = vld [vmem:[%s882 + $0x10] sm:$0xff]
        %v886 = vld [vmem:[%s882 + $0x18] sm:$0xff]
        %887 = vmatprep.subr.bf16.mxu0 %v472
        %888 = vmatpush1.bf16.msra.mxu0 %v471
        %889 = vmatprep.subr.bf16.mxu0 %v468
        %890 = vmatpush1.bf16.msra.mxu0 %v467
        %891 = vmatprep.subr.bf16.mxu0 %v464
        %892 = vmatpush1.bf16.msra.mxu0 %v463
        %893 = vmatprep.subr.bf16.mxu0 %v460
        %894 = vmatpush1.bf16.msra.mxu0 %v459
        %895 = vmatprep.subr.bf16.mxu0 %v456
        %896 = vmatpush1.bf16.msra.mxu0 %v455
        %897 = vmatprep.subr.bf16.mxu0 %v452
        %898 = vmatpush1.bf16.msra.mxu0 %v451
        %899 = vmatprep.subr.bf16.mxu0 %v448
        %900 = vmatpush1.bf16.msra.mxu0 %v447
        %901 = vmatprep.subr.bf16.mxu0 %v444
        %902 = vmatpush1.bf16.msra.mxu0 %v443
        %903 = vmatprep.subr.bf16.mxu0 0
        %904 = vmatpush2.bf16.msra.mxu0 0
        %905 = vmatprep.subr.bf16.mxu0 0
        %906 = vmatpush2.bf16.msra.mxu0 0
        %907 = vmatprep.subr.bf16.mxu0 0
        %908 = vmatpush2.bf16.msra.mxu0 0
        %909 = vmatprep.subr.bf16.mxu0 0
        %910 = vmatpush2.bf16.msra.mxu0 0
        %911 = vmatprep.subr.bf16.mxu0 0
        %912 = vmatpush2.bf16.msra.mxu0 0
        %913 = vmatprep.subr.bf16.mxu0 0
        %914 = vmatpush2.bf16.msra.mxu0 0
        %915 = vmatprep.subr.bf16.mxu0 0
        %916 = vmatpush2.bf16.msra.mxu0 0
        %917 = vmatprep.subr.bf16.mxu0 0
        %918 = vmatpush2.bf16.msra.mxu0 0
        %919 = vmatprep.mubr.bf16.mxu0 0
        %920 = vmatmul.mubr.bf16.gmra.mxu0 %v880
        %v921 = vpop.f32.mrf.mxu0
        %v922 = vadd.f32 0.0, %v921
        %v923 = vpop.f32.mrf.mxu0
        %v924 = vadd.f32 0.0, %v923
        %v925 = vpop.f32.mrf.mxu0
        %v926 = vpop.f32.mrf.mxu0
        %927 = vdwg.mxu0
        %928 = vmatprep.subr.bf16.mxu0 %v474
        %929 = vmatpush1.bf16.msra.mxu0 %v473
        %930 = vmatprep.subr.bf16.mxu0 %v470
        %931 = vmatpush1.bf16.msra.mxu0 %v469
        %932 = vmatprep.subr.bf16.mxu0 %v466
        %933 = vmatpush1.bf16.msra.mxu0 %v465
        %934 = vmatprep.subr.bf16.mxu0 %v462
        %935 = vmatpush1.bf16.msra.mxu0 %v461
        %936 = vmatprep.subr.bf16.mxu0 %v458
        %937 = vmatpush1.bf16.msra.mxu0 %v457
        %938 = vmatprep.subr.bf16.mxu0 %v454
        %939 = vmatpush1.bf16.msra.mxu0 %v453
        %940 = vmatprep.subr.bf16.mxu0 %v450
        %941 = vmatpush1.bf16.msra.mxu0 %v449
        %942 = vmatprep.subr.bf16.mxu0 %v446
        %943 = vmatpush1.bf16.msra.mxu0 %v445
        %944 = vmatprep.subr.bf16.mxu0 0
        %945 = vmatpush2.bf16.msra.mxu0 0
        %946 = vmatprep.subr.bf16.mxu0 0
        %947 = vmatpush2.bf16.msra.mxu0 0
        %948 = vmatprep.subr.bf16.mxu0 0
        %949 = vmatpush2.bf16.msra.mxu0 0
        %950 = vmatprep.subr.bf16.mxu0 0
        %951 = vmatpush2.bf16.msra.mxu0 0
        %952 = vmatprep.subr.bf16.mxu0 0
        %953 = vmatpush2.bf16.msra.mxu0 0
        %954 = vmatprep.subr.bf16.mxu0 0
        %955 = vmatpush2.bf16.msra.mxu0 0
        %956 = vmatprep.subr.bf16.mxu0 0
        %957 = vmatpush2.bf16.msra.mxu0 0
        %958 = vmatprep.subr.bf16.mxu0 0
        %959 = vmatpush2.bf16.msra.mxu0 0
        %960 = vmatprep.mubr.bf16.mxu0 0
        %961 = vmatmul.mubr.bf16.gmra.mxu0 %v880
        %v962 = vpop.f32.mrf.mxu0
        %v963 = vadd.f32 0.0, %v962
        %v964 = vpop.f32.mrf.mxu0
        %v965 = vadd.f32 0.0, %v964
        %v966 = vpop.f32.mrf.mxu0
        %v967 = vpop.f32.mrf.mxu0
        %968 = vdwg.mxu0
        %v969 = vadd.f32 %v883, %v922
        %v970 = vadd.f32 %v884, %v924
        %v971 = vadd.f32 %v885, %v963
        %v972 = vadd.f32 %v886, %v965
        %v973 = vxor.u32 %v969, 2147483648
        %v974 = vmul.f32 %v973, 1.442695
        %v975 = vpow.pop %v974
        %v976 = vadd.f32 %v975, 1.0
        %v977 = vrcp.pop %v976
        %v978 = vmul.f32 1.0, %v977
        %v979 = vxor.u32 %v970, 2147483648
        %v980 = vmul.f32 %v979, 1.442695
        %v981 = vpow.pop %v980
        %v982 = vadd.f32 %v981, 1.0
        %v983 = vrcp.pop %v982
        %v984 = vmul.f32 1.0, %v983
        %v985 = vtanh.pop %v971
        %v986 = vxor.u32 %v972, 2147483648
        %v987 = vmul.f32 %v986, 1.442695
        %v988 = vpow.pop %v987
        %v989 = vadd.f32 %v988, 1.0
        %v990 = vrcp.pop %v989
        %v991 = vmul.f32 1.0, %v990
        %v992 = vmul.f32 %v984, %v881
        %v993 = vmul.f32 %v978, %v985
        %v994 = vadd.f32 %v992, %v993
        %v995 = vtanh.pop %v994
        %v996 = vmul.f32 %v991, %v995
        %v997 = vpack.c.bf16 %v996, %v996
        %s998 = sadd.s32 %s340, 3
        %v999 = vstv %s998
        %vm1000 = vcmp.lt.s32.totalorder %v999, %v307
        %v1001 = vsel %vm1000, 1, 0
        %1002 = vset.pattern.permute.xlu0 0
        %1003 = vperm.xlu0 %1002, %v1001
        %v1004 = vpop.permute.xlu0 %1003
        %vm1005 = vcmp.eq.s32.totalorder %v1004, 1
        %vm1006 = vmpackc.low %vm1005, %vm1005
        %v1007 = vsel %vm1006, %v997, %v880
        %v1008 = vsel %vm1005, %v994, %v881
        %s1009 = scalar_lea.vmem %s261, 128 [#allocation4]
        %v1010 = vld [vmem:[%s1009] sm:$0xff]
        %v1011 = vld [vmem:[%s1009 + $0x8] sm:$0xff]
        %v1012 = vld [vmem:[%s1009 + $0x10] sm:$0xff]
        %v1013 = vld [vmem:[%s1009 + $0x18] sm:$0xff]
        %1014 = vmatprep.subr.bf16.mxu0 %v472
        %1015 = vmatpush1.bf16.msra.mxu0 %v471
        %1016 = vmatprep.subr.bf16.mxu0 %v468
        %1017 = vmatpush1.bf16.msra.mxu0 %v467
        %1018 = vmatprep.subr.bf16.mxu0 %v464
        %1019 = vmatpush1.bf16.msra.mxu0 %v463
        %1020 = vmatprep.subr.bf16.mxu0 %v460
        %1021 = vmatpush1.bf16.msra.mxu0 %v459
        %1022 = vmatprep.subr.bf16.mxu0 %v456
        %1023 = vmatpush1.bf16.msra.mxu0 %v455
        %1024 = vmatprep.subr.bf16.mxu0 %v452
        %1025 = vmatpush1.bf16.msra.mxu0 %v451
        %1026 = vmatprep.subr.bf16.mxu0 %v448
        %1027 = vmatpush1.bf16.msra.mxu0 %v447
        %1028 = vmatprep.subr.bf16.mxu0 %v444
        %1029 = vmatpush1.bf16.msra.mxu0 %v443
        %1030 = vmatprep.subr.bf16.mxu0 0
        %1031 = vmatpush2.bf16.msra.mxu0 0
        %1032 = vmatprep.subr.bf16.mxu0 0
        %1033 = vmatpush2.bf16.msra.mxu0 0
        %1034 = vmatprep.subr.bf16.mxu0 0
        %1035 = vmatpush2.bf16.msra.mxu0 0
        %1036 = vmatprep.subr.bf16.mxu0 0
        %1037 = vmatpush2.bf16.msra.mxu0 0
        %1038 = vmatprep.subr.bf16.mxu0 0
        %1039 = vmatpush2.bf16.msra.mxu0 0
        %1040 = vmatprep.subr.bf16.mxu0 0
        %1041 = vmatpush2.bf16.msra.mxu0 0
        %1042 = vmatprep.subr.bf16.mxu0 0
        %1043 = vmatpush2.bf16.msra.mxu0 0
        %1044 = vmatprep.subr.bf16.mxu0 0
        %1045 = vmatpush2.bf16.msra.mxu0 0
        %1046 = vmatprep.mubr.bf16.mxu0 0
        %1047 = vmatmul.mubr.bf16.gmra.mxu0 %v1007
        %v1048 = vpop.f32.mrf.mxu0
        %v1049 = vadd.f32 0.0, %v1048
        %v1050 = vpop.f32.mrf.mxu0
        %v1051 = vadd.f32 0.0, %v1050
        %v1052 = vpop.f32.mrf.mxu0
        %v1053 = vpop.f32.mrf.mxu0
        %1054 = vdwg.mxu0
        %1055 = vmatprep.subr.bf16.mxu0 %v474
        %1056 = vmatpush1.bf16.msra.mxu0 %v473
        %1057 = vmatprep.subr.bf16.mxu0 %v470
        %1058 = vmatpush1.bf16.msra.mxu0 %v469
        %1059 = vmatprep.subr.bf16.mxu0 %v466
        %1060 = vmatpush1.bf16.msra.mxu0 %v465
        %1061 = vmatprep.subr.bf16.mxu0 %v462
        %1062 = vmatpush1.bf16.msra.mxu0 %v461
        %1063 = vmatprep.subr.bf16.mxu0 %v458
        %1064 = vmatpush1.bf16.msra.mxu0 %v457
        %1065 = vmatprep.subr.bf16.mxu0 %v454
        %1066 = vmatpush1.bf16.msra.mxu0 %v453
        %1067 = vmatprep.subr.bf16.mxu0 %v450
        %1068 = vmatpush1.bf16.msra.mxu0 %v449
        %1069 = vmatprep.subr.bf16.mxu0 %v446
        %1070 = vmatpush1.bf16.msra.mxu0 %v445
        %1071 = vmatprep.subr.bf16.mxu0 0
        %1072 = vmatpush2.bf16.msra.mxu0 0
        %1073 = vmatprep.subr.bf16.mxu0 0
        %1074 = vmatpush2.bf16.msra.mxu0 0
        %1075 = vmatprep.subr.bf16.mxu0 0
        %1076 = vmatpush2.bf16.msra.mxu0 0
        %1077 = vmatprep.subr.bf16.mxu0 0
        %1078 = vmatpush2.bf16.msra.mxu0 0
        %1079 = vmatprep.subr.bf16.mxu0 0
        %1080 = vmatpush2.bf16.msra.mxu0 0
        %1081 = vmatprep.subr.bf16.mxu0 0
        %1082 = vmatpush2.bf16.msra.mxu0 0
        %1083 = vmatprep.subr.bf16.mxu0 0
        %1084 = vmatpush2.bf16.msra.mxu0 0
        %1085 = vmatprep.subr.bf16.mxu0 0
        %1086 = vmatpush2.bf16.msra.mxu0 0
        %1087 = vmatprep.mubr.bf16.mxu0 0
        %1088 = vmatmul.mubr.bf16.gmra.mxu0 %v1007
        %v1089 = vpop.f32.mrf.mxu0
        %v1090 = vadd.f32 0.0, %v1089
        %v1091 = vpop.f32.mrf.mxu0
        %v1092 = vadd.f32 0.0, %v1091
        %v1093 = vpop.f32.mrf.mxu0
        %v1094 = vpop.f32.mrf.mxu0
        %1095 = vdwg.mxu0
        %v1096 = vadd.f32 %v1010, %v1049
        %v1097 = vadd.f32 %v1011, %v1051
        %v1098 = vadd.f32 %v1012, %v1090
        %v1099 = vadd.f32 %v1013, %v1092
        %v1100 = vxor.u32 %v1096, 2147483648
        %v1101 = vmul.f32 %v1100, 1.442695
        %v1102 = vpow.pop %v1101
        %v1103 = vadd.f32 %v1102, 1.0
        %v1104 = vrcp.pop %v1103
        %v1105 = vmul.f32 1.0, %v1104
        %v1106 = vxor.u32 %v1097, 2147483648
        %v1107 = vmul.f32 %v1106, 1.442695
        %v1108 = vpow.pop %v1107
        %v1109 = vadd.f32 %v1108, 1.0
        %v1110 = vrcp.pop %v1109
        %v1111 = vmul.f32 1.0, %v1110
        %v1112 = vtanh.pop %v1098
        %v1113 = vxor.u32 %v1099, 2147483648
        %v1114 = vmul.f32 %v1113, 1.442695
        %v1115 = vpow.pop %v1114
        %v1116 = vadd.f32 %v1115, 1.0
        %v1117 = vrcp.pop %v1116
        %v1118 = vmul.f32 1.0, %v1117
        %v1119 = vmul.f32 %v1111, %v1008
        %v1120 = vmul.f32 %v1105, %v1112
        %v1121 = vadd.f32 %v1119, %v1120
        %v1122 = vtanh.pop %v1121
        %v1123 = vmul.f32 %v1118, %v1122
        %v1124 = vpack.c.bf16 %v1123, %v1123
        %s1125 = sadd.s32 %s340, 4
        %v1126 = vstv %s1125
        %vm1127 = vcmp.lt.s32.totalorder %v1126, %v307
        %v1128 = vsel %vm1127, 1, 0
        %1129 = vset.pattern.permute.xlu0 0
        %1130 = vperm.xlu0 %1129, %v1128
        %v1131 = vpop.permute.xlu0 %1130
        %vm1132 = vcmp.eq.s32.totalorder %v1131, 1
        %vm1133 = vmpackc.low %vm1132, %vm1132
        %v1134 = vsel %vm1133, %v1124, %v1007
        %v1135 = vsel %vm1132, %v1121, %v1008
        %s1136 = scalar_lea.vmem %s261, 160 [#allocation4]
        %v1137 = vld [vmem:[%s1136] sm:$0xff]
        %v1138 = vld [vmem:[%s1136 + $0x8] sm:$0xff]
        %v1139 = vld [vmem:[%s1136 + $0x10] sm:$0xff]
        %v1140 = vld [vmem:[%s1136 + $0x18] sm:$0xff]
        %1141 = vmatprep.subr.bf16.mxu0 %v472
        %1142 = vmatpush1.bf16.msra.mxu0 %v471
        %1143 = vmatprep.subr.bf16.mxu0 %v468
        %1144 = vmatpush1.bf16.msra.mxu0 %v467
        %1145 = vmatprep.subr.bf16.mxu0 %v464
        %1146 = vmatpush1.bf16.msra.mxu0 %v463
        %1147 = vmatprep.subr.bf16.mxu0 %v460
        %1148 = vmatpush1.bf16.msra.mxu0 %v459
        %1149 = vmatprep.subr.bf16.mxu0 %v456
        %1150 = vmatpush1.bf16.msra.mxu0 %v455
        %1151 = vmatprep.subr.bf16.mxu0 %v452
        %1152 = vmatpush1.bf16.msra.mxu0 %v451
        %1153 = vmatprep.subr.bf16.mxu0 %v448
        %1154 = vmatpush1.bf16.msra.mxu0 %v447
        %1155 = vmatprep.subr.bf16.mxu0 %v444
        %1156 = vmatpush1.bf16.msra.mxu0 %v443
        %1157 = vmatprep.subr.bf16.mxu0 0
        %1158 = vmatpush2.bf16.msra.mxu0 0
        %1159 = vmatprep.subr.bf16.mxu0 0
        %1160 = vmatpush2.bf16.msra.mxu0 0
        %1161 = vmatprep.subr.bf16.mxu0 0
        %1162 = vmatpush2.bf16.msra.mxu0 0
        %1163 = vmatprep.subr.bf16.mxu0 0
        %1164 = vmatpush2.bf16.msra.mxu0 0
        %1165 = vmatprep.subr.bf16.mxu0 0
        %1166 = vmatpush2.bf16.msra.mxu0 0
        %1167 = vmatprep.subr.bf16.mxu0 0
        %1168 = vmatpush2.bf16.msra.mxu0 0
        %1169 = vmatprep.subr.bf16.mxu0 0
        %1170 = vmatpush2.bf16.msra.mxu0 0
        %1171 = vmatprep.subr.bf16.mxu0 0
        %1172 = vmatpush2.bf16.msra.mxu0 0
        %1173 = vmatprep.mubr.bf16.mxu0 0
        %1174 = vmatmul.mubr.bf16.gmra.mxu0 %v1134
        %v1175 = vpop.f32.mrf.mxu0
        %v1176 = vadd.f32 0.0, %v1175
        %v1177 = vpop.f32.mrf.mxu0
        %v1178 = vadd.f32 0.0, %v1177
        %v1179 = vpop.f32.mrf.mxu0
        %v1180 = vpop.f32.mrf.mxu0
        %1181 = vdwg.mxu0
        %1182 = vmatprep.subr.bf16.mxu0 %v474
        %1183 = vmatpush1.bf16.msra.mxu0 %v473
        %1184 = vmatprep.subr.bf16.mxu0 %v470
        %1185 = vmatpush1.bf16.msra.mxu0 %v469
        %1186 = vmatprep.subr.bf16.mxu0 %v466
        %1187 = vmatpush1.bf16.msra.mxu0 %v465
        %1188 = vmatprep.subr.bf16.mxu0 %v462
        %1189 = vmatpush1.bf16.msra.mxu0 %v461
        %1190 = vmatprep.subr.bf16.mxu0 %v458
        %1191 = vmatpush1.bf16.msra.mxu0 %v457
        %1192 = vmatprep.subr.bf16.mxu0 %v454
        %1193 = vmatpush1.bf16.msra.mxu0 %v453
        %1194 = vmatprep.subr.bf16.mxu0 %v450
        %1195 = vmatpush1.bf16.msra.mxu0 %v449
        %1196 = vmatprep.subr.bf16.mxu0 %v446
        %1197 = vmatpush1.bf16.msra.mxu0 %v445
        %1198 = vmatprep.subr.bf16.mxu0 0
        %1199 = vmatpush2.bf16.msra.mxu0 0
        %1200 = vmatprep.subr.bf16.mxu0 0
        %1201 = vmatpush2.bf16.msra.mxu0 0
        %1202 = vmatprep.subr.bf16.mxu0 0
        %1203 = vmatpush2.bf16.msra.mxu0 0
        %1204 = vmatprep.subr.bf16.mxu0 0
        %1205 = vmatpush2.bf16.msra.mxu0 0
        %1206 = vmatprep.subr.bf16.mxu0 0
        %1207 = vmatpush2.bf16.msra.mxu0 0
        %1208 = vmatprep.subr.bf16.mxu0 0
        %1209 = vmatpush2.bf16.msra.mxu0 0
        %1210 = vmatprep.subr.bf16.mxu0 0
        %1211 = vmatpush2.bf16.msra.mxu0 0
        %1212 = vmatprep.subr.bf16.mxu0 0
        %1213 = vmatpush2.bf16.msra.mxu0 0
        %1214 = vmatprep.mubr.bf16.mxu0 0
        %1215 = vmatmul.mubr.bf16.gmra.mxu0 %v1134
        %v1216 = vpop.f32.mrf.mxu0
        %v1217 = vadd.f32 0.0, %v1216
        %v1218 = vpop.f32.mrf.mxu0
        %v1219 = vadd.f32 0.0, %v1218
        %v1220 = vpop.f32.mrf.mxu0
        %v1221 = vpop.f32.mrf.mxu0
        %1222 = vdwg.mxu0
        %v1223 = vadd.f32 %v1137, %v1176
        %v1224 = vadd.f32 %v1138, %v1178
        %v1225 = vadd.f32 %v1139, %v1217
        %v1226 = vadd.f32 %v1140, %v1219
        %v1227 = vxor.u32 %v1223, 2147483648
        %v1228 = vmul.f32 %v1227, 1.442695
        %v1229 = vpow.pop %v1228
        %v1230 = vadd.f32 %v1229, 1.0
        %v1231 = vrcp.pop %v1230
        %v1232 = vmul.f32 1.0, %v1231
        %v1233 = vxor.u32 %v1224, 2147483648
        %v1234 = vmul.f32 %v1233, 1.442695
        %v1235 = vpow.pop %v1234
        %v1236 = vadd.f32 %v1235, 1.0
        %v1237 = vrcp.pop %v1236
        %v1238 = vmul.f32 1.0, %v1237
        %v1239 = vtanh.pop %v1225
        %v1240 = vxor.u32 %v1226, 2147483648
        %v1241 = vmul.f32 %v1240, 1.442695
        %v1242 = vpow.pop %v1241
        %v1243 = vadd.f32 %v1242, 1.0
        %v1244 = vrcp.pop %v1243
        %v1245 = vmul.f32 1.0, %v1244
        %v1246 = vmul.f32 %v1238, %v1135
        %v1247 = vmul.f32 %v1232, %v1239
        %v1248 = vadd.f32 %v1246, %v1247
        %v1249 = vtanh.pop %v1248
        %v1250 = vmul.f32 %v1245, %v1249
        %v1251 = vpack.c.bf16 %v1250, %v1250
        %s1252 = sadd.s32 %s340, 5
        %v1253 = vstv %s1252
        %vm1254 = vcmp.lt.s32.totalorder %v1253, %v307
        %v1255 = vsel %vm1254, 1, 0
        %1256 = vset.pattern.permute.xlu0 0
        %1257 = vperm.xlu0 %1256, %v1255
        %v1258 = vpop.permute.xlu0 %1257
        %vm1259 = vcmp.eq.s32.totalorder %v1258, 1
        %vm1260 = vmpackc.low %vm1259, %vm1259
        %v1261 = vsel %vm1260, %v1251, %v1134
        %v1262 = vsel %vm1259, %v1248, %v1135
        %s1263 = scalar_lea.vmem %s261, 192 [#allocation4]
        %v1264 = vld [vmem:[%s1263] sm:$0xff]
        %v1265 = vld [vmem:[%s1263 + $0x8] sm:$0xff]
        %v1266 = vld [vmem:[%s1263 + $0x10] sm:$0xff]
        %v1267 = vld [vmem:[%s1263 + $0x18] sm:$0xff]
        %1268 = vmatprep.subr.bf16.mxu0 %v472
        %1269 = vmatpush1.bf16.msra.mxu0 %v471
        %1270 = vmatprep.subr.bf16.mxu0 %v468
        %1271 = vmatpush1.bf16.msra.mxu0 %v467
        %1272 = vmatprep.subr.bf16.mxu0 %v464
        %1273 = vmatpush1.bf16.msra.mxu0 %v463
        %1274 = vmatprep.subr.bf16.mxu0 %v460
        %1275 = vmatpush1.bf16.msra.mxu0 %v459
        %1276 = vmatprep.subr.bf16.mxu0 %v456
        %1277 = vmatpush1.bf16.msra.mxu0 %v455
        %1278 = vmatprep.subr.bf16.mxu0 %v452
        %1279 = vmatpush1.bf16.msra.mxu0 %v451
        %1280 = vmatprep.subr.bf16.mxu0 %v448
        %1281 = vmatpush1.bf16.msra.mxu0 %v447
        %1282 = vmatprep.subr.bf16.mxu0 %v444
        %1283 = vmatpush1.bf16.msra.mxu0 %v443
        %1284 = vmatprep.subr.bf16.mxu0 0
        %1285 = vmatpush2.bf16.msra.mxu0 0
        %1286 = vmatprep.subr.bf16.mxu0 0
        %1287 = vmatpush2.bf16.msra.mxu0 0
        %1288 = vmatprep.subr.bf16.mxu0 0
        %1289 = vmatpush2.bf16.msra.mxu0 0
        %1290 = vmatprep.subr.bf16.mxu0 0
        %1291 = vmatpush2.bf16.msra.mxu0 0
        %1292 = vmatprep.subr.bf16.mxu0 0
        %1293 = vmatpush2.bf16.msra.mxu0 0
        %1294 = vmatprep.subr.bf16.mxu0 0
        %1295 = vmatpush2.bf16.msra.mxu0 0
        %1296 = vmatprep.subr.bf16.mxu0 0
        %1297 = vmatpush2.bf16.msra.mxu0 0
        %1298 = vmatprep.subr.bf16.mxu0 0
        %1299 = vmatpush2.bf16.msra.mxu0 0
        %1300 = vmatprep.mubr.bf16.mxu0 0
        %1301 = vmatmul.mubr.bf16.gmra.mxu0 %v1261
        %v1302 = vpop.f32.mrf.mxu0
        %v1303 = vadd.f32 0.0, %v1302
        %v1304 = vpop.f32.mrf.mxu0
        %v1305 = vadd.f32 0.0, %v1304
        %v1306 = vpop.f32.mrf.mxu0
        %v1307 = vpop.f32.mrf.mxu0
        %1308 = vdwg.mxu0
        %1309 = vmatprep.subr.bf16.mxu0 %v474
        %1310 = vmatpush1.bf16.msra.mxu0 %v473
        %1311 = vmatprep.subr.bf16.mxu0 %v470
        %1312 = vmatpush1.bf16.msra.mxu0 %v469
        %1313 = vmatprep.subr.bf16.mxu0 %v466
        %1314 = vmatpush1.bf16.msra.mxu0 %v465
        %1315 = vmatprep.subr.bf16.mxu0 %v462
        %1316 = vmatpush1.bf16.msra.mxu0 %v461
        %1317 = vmatprep.subr.bf16.mxu0 %v458
        %1318 = vmatpush1.bf16.msra.mxu0 %v457
        %1319 = vmatprep.subr.bf16.mxu0 %v454
        %1320 = vmatpush1.bf16.msra.mxu0 %v453
        %1321 = vmatprep.subr.bf16.mxu0 %v450
        %1322 = vmatpush1.bf16.msra.mxu0 %v449
        %1323 = vmatprep.subr.bf16.mxu0 %v446
        %1324 = vmatpush1.bf16.msra.mxu0 %v445
        %1325 = vmatprep.subr.bf16.mxu0 0
        %1326 = vmatpush2.bf16.msra.mxu0 0
        %1327 = vmatprep.subr.bf16.mxu0 0
        %1328 = vmatpush2.bf16.msra.mxu0 0
        %1329 = vmatprep.subr.bf16.mxu0 0
        %1330 = vmatpush2.bf16.msra.mxu0 0
        %1331 = vmatprep.subr.bf16.mxu0 0
        %1332 = vmatpush2.bf16.msra.mxu0 0
        %1333 = vmatprep.subr.bf16.mxu0 0
        %1334 = vmatpush2.bf16.msra.mxu0 0
        %1335 = vmatprep.subr.bf16.mxu0 0
        %1336 = vmatpush2.bf16.msra.mxu0 0
        %1337 = vmatprep.subr.bf16.mxu0 0
        %1338 = vmatpush2.bf16.msra.mxu0 0
        %1339 = vmatprep.subr.bf16.mxu0 0
        %1340 = vmatpush2.bf16.msra.mxu0 0
        %1341 = vmatprep.mubr.bf16.mxu0 0
        %1342 = vmatmul.mubr.bf16.gmra.mxu0 %v1261
        %v1343 = vpop.f32.mrf.mxu0
        %v1344 = vadd.f32 0.0, %v1343
        %v1345 = vpop.f32.mrf.mxu0
        %v1346 = vadd.f32 0.0, %v1345
        %v1347 = vpop.f32.mrf.mxu0
        %v1348 = vpop.f32.mrf.mxu0
        %1349 = vdwg.mxu0
        %v1350 = vadd.f32 %v1264, %v1303
        %v1351 = vadd.f32 %v1265, %v1305
        %v1352 = vadd.f32 %v1266, %v1344
        %v1353 = vadd.f32 %v1267, %v1346
        %v1354 = vxor.u32 %v1350, 2147483648
        %v1355 = vmul.f32 %v1354, 1.442695
        %v1356 = vpow.pop %v1355
        %v1357 = vadd.f32 %v1356, 1.0
        %v1358 = vrcp.pop %v1357
        %v1359 = vmul.f32 1.0, %v1358
        %v1360 = vxor.u32 %v1351, 2147483648
        %v1361 = vmul.f32 %v1360, 1.442695
        %v1362 = vpow.pop %v1361
        %v1363 = vadd.f32 %v1362, 1.0
        %v1364 = vrcp.pop %v1363
        %v1365 = vmul.f32 1.0, %v1364
        %v1366 = vtanh.pop %v1352
        %v1367 = vxor.u32 %v1353, 2147483648
        %v1368 = vmul.f32 %v1367, 1.442695
        %v1369 = vpow.pop %v1368
        %v1370 = vadd.f32 %v1369, 1.0
        %v1371 = vrcp.pop %v1370
        %v1372 = vmul.f32 1.0, %v1371
        %v1373 = vmul.f32 %v1365, %v1262
        %v1374 = vmul.f32 %v1359, %v1366
        %v1375 = vadd.f32 %v1373, %v1374
        %v1376 = vtanh.pop %v1375
        %v1377 = vmul.f32 %v1372, %v1376
        %v1378 = vpack.c.bf16 %v1377, %v1377
        %s1379 = sadd.s32 %s340, 6
        %v1380 = vstv %s1379
        %vm1381 = vcmp.lt.s32.totalorder %v1380, %v307
        %v1382 = vsel %vm1381, 1, 0
        %1383 = vset.pattern.permute.xlu0 0
        %1384 = vperm.xlu0 %1383, %v1382
        %v1385 = vpop.permute.xlu0 %1384
        %vm1386 = vcmp.eq.s32.totalorder %v1385, 1
        %vm1387 = vmpackc.low %vm1386, %vm1386
        %v1388 = vsel %vm1387, %v1378, %v1261
        %v1389 = vsel %vm1386, %v1375, %v1262
        %s1390 = scalar_lea.vmem %s261, 224 [#allocation4]
        %v1391 = vld [vmem:[%s1390] sm:$0xff]
        %v1392 = vld [vmem:[%s1390 + $0x8] sm:$0xff]
        %v1393 = vld [vmem:[%s1390 + $0x10] sm:$0xff]
        %v1394 = vld [vmem:[%s1390 + $0x18] sm:$0xff]
        %1395 = vmatprep.subr.bf16.mxu0 %v472
        %1396 = vmatpush1.bf16.msra.mxu0 %v471
        %1397 = vmatprep.subr.bf16.mxu0 %v468
        %1398 = vmatpush1.bf16.msra.mxu0 %v467
        %1399 = vmatprep.subr.bf16.mxu0 %v464
        %1400 = vmatpush1.bf16.msra.mxu0 %v463
        %1401 = vmatprep.subr.bf16.mxu0 %v460
        %1402 = vmatpush1.bf16.msra.mxu0 %v459
        %1403 = vmatprep.subr.bf16.mxu0 %v456
        %1404 = vmatpush1.bf16.msra.mxu0 %v455
        %1405 = vmatprep.subr.bf16.mxu0 %v452
        %1406 = vmatpush1.bf16.msra.mxu0 %v451
        %1407 = vmatprep.subr.bf16.mxu0 %v448
        %1408 = vmatpush1.bf16.msra.mxu0 %v447
        %1409 = vmatprep.subr.bf16.mxu0 %v444
        %1410 = vmatpush1.bf16.msra.mxu0 %v443
        %1411 = vmatprep.subr.bf16.mxu0 0
        %1412 = vmatpush2.bf16.msra.mxu0 0
        %1413 = vmatprep.subr.bf16.mxu0 0
        %1414 = vmatpush2.bf16.msra.mxu0 0
        %1415 = vmatprep.subr.bf16.mxu0 0
        %1416 = vmatpush2.bf16.msra.mxu0 0
        %1417 = vmatprep.subr.bf16.mxu0 0
        %1418 = vmatpush2.bf16.msra.mxu0 0
        %1419 = vmatprep.subr.bf16.mxu0 0
        %1420 = vmatpush2.bf16.msra.mxu0 0
        %1421 = vmatprep.subr.bf16.mxu0 0
        %1422 = vmatpush2.bf16.msra.mxu0 0
        %1423 = vmatprep.subr.bf16.mxu0 0
        %1424 = vmatpush2.bf16.msra.mxu0 0
        %1425 = vmatprep.subr.bf16.mxu0 0
        %1426 = vmatpush2.bf16.msra.mxu0 0
        %1427 = vmatprep.mubr.bf16.mxu0 0
        %1428 = vmatmul.mubr.bf16.gmra.mxu0 %v1388
        %v1429 = vpop.f32.mrf.mxu0
        %v1430 = vadd.f32 0.0, %v1429
        %v1431 = vpop.f32.mrf.mxu0
        %v1432 = vadd.f32 0.0, %v1431
        %v1433 = vpop.f32.mrf.mxu0
        %v1434 = vpop.f32.mrf.mxu0
        %1435 = vdwg.mxu0
        %1436 = vmatprep.subr.bf16.mxu0 %v474
        %1437 = vmatpush1.bf16.msra.mxu0 %v473
        %1438 = vmatprep.subr.bf16.mxu0 %v470
        %1439 = vmatpush1.bf16.msra.mxu0 %v469
        %1440 = vmatprep.subr.bf16.mxu0 %v466
        %1441 = vmatpush1.bf16.msra.mxu0 %v465
        %1442 = vmatprep.subr.bf16.mxu0 %v462
        %1443 = vmatpush1.bf16.msra.mxu0 %v461
        %1444 = vmatprep.subr.bf16.mxu0 %v458
        %1445 = vmatpush1.bf16.msra.mxu0 %v457
        %1446 = vmatprep.subr.bf16.mxu0 %v454
        %1447 = vmatpush1.bf16.msra.mxu0 %v453
        %1448 = vmatprep.subr.bf16.mxu0 %v450
        %1449 = vmatpush1.bf16.msra.mxu0 %v449
        %1450 = vmatprep.subr.bf16.mxu0 %v446
        %1451 = vmatpush1.bf16.msra.mxu0 %v445
        %1452 = vmatprep.subr.bf16.mxu0 0
        %1453 = vmatpush2.bf16.msra.mxu0 0
        %1454 = vmatprep.subr.bf16.mxu0 0
        %1455 = vmatpush2.bf16.msra.mxu0 0
        %1456 = vmatprep.subr.bf16.mxu0 0
        %1457 = vmatpush2.bf16.msra.mxu0 0
        %1458 = vmatprep.subr.bf16.mxu0 0
        %1459 = vmatpush2.bf16.msra.mxu0 0
        %1460 = vmatprep.subr.bf16.mxu0 0
        %1461 = vmatpush2.bf16.msra.mxu0 0
        %1462 = vmatprep.subr.bf16.mxu0 0
        %1463 = vmatpush2.bf16.msra.mxu0 0
        %1464 = vmatprep.subr.bf16.mxu0 0
        %1465 = vmatpush2.bf16.msra.mxu0 0
        %1466 = vmatprep.subr.bf16.mxu0 0
        %1467 = vmatpush2.bf16.msra.mxu0 0
        %1468 = vmatprep.mubr.bf16.mxu0 0
        %1469 = vmatmul.mubr.bf16.gmra.mxu0 %v1388
        %v1470 = vpop.f32.mrf.mxu0
        %v1471 = vadd.f32 0.0, %v1470
        %v1472 = vpop.f32.mrf.mxu0
        %v1473 = vadd.f32 0.0, %v1472
        %v1474 = vpop.f32.mrf.mxu0
        %v1475 = vpop.f32.mrf.mxu0
        %1476 = vdwg.mxu0
        %v1477 = vadd.f32 %v1391, %v1430
        %v1478 = vadd.f32 %v1392, %v1432
        %v1479 = vadd.f32 %v1393, %v1471
        %v1480 = vadd.f32 %v1394, %v1473
        %v1481 = vxor.u32 %v1477, 2147483648
        %v1482 = vmul.f32 %v1481, 1.442695
        %v1483 = vpow.pop %v1482
        %v1484 = vadd.f32 %v1483, 1.0
        %v1485 = vrcp.pop %v1484
        %v1486 = vmul.f32 1.0, %v1485
        %v1487 = vxor.u32 %v1478, 2147483648
        %v1488 = vmul.f32 %v1487, 1.442695
        %v1489 = vpow.pop %v1488
        %v1490 = vadd.f32 %v1489, 1.0
        %v1491 = vrcp.pop %v1490
        %v1492 = vmul.f32 1.0, %v1491
        %v1493 = vtanh.pop %v1479
        %v1494 = vxor.u32 %v1480, 2147483648
        %v1495 = vmul.f32 %v1494, 1.442695
        %v1496 = vpow.pop %v1495
        %v1497 = vadd.f32 %v1496, 1.0
        %v1498 = vrcp.pop %v1497
        %v1499 = vmul.f32 1.0, %v1498
        %v1500 = vmul.f32 %v1492, %v1389
        %v1501 = vmul.f32 %v1486, %v1493
        %v1502 = vadd.f32 %v1500, %v1501
        %v1503 = vtanh.pop %v1502
        %v1504 = vmul.f32 %v1499, %v1503
        %v1505 = vpack.c.bf16 %v1504, %v1504
        %s1506 = sadd.s32 %s340, 7
        %v1507 = vstv %s1506
        %vm1508 = vcmp.lt.s32.totalorder %v1507, %v307
        %v1509 = vsel %vm1508, 1, 0
        %1510 = vset.pattern.permute.xlu0 0
        %1511 = vperm.xlu0 %1510, %v1509
        %v1512 = vpop.permute.xlu0 %1511
        %vm1513 = vcmp.eq.s32.totalorder %v1512, 1
        %vm1514 = vmpackc.low %vm1513, %vm1513
        %v1515 = vsel %vm1514, %v1505, %v1388
        %v1516 = vsel %vm1513, %v1502, %v1389
        %1517 = vst [vmem:[#allocation2] sm:$0xf] %v1515
        %1518 = vst [vmem:[#allocation3] sm:$0xff] %v1516
        %p1519 = scmp.eq.s32.totalorder %s26, 2
        // Predicated region
        $region57: #{tpu_custom_call.1} parent=39 // pred_check
          %p1520 = pneg %p1519
        $region58: #{tpu_custom_call.1} parent=39 // pred_check_branch
          %1522 = sbr.rel (%p1520) target = $region60
        $region59: #{tpu_custom_call.1} parent=39 // pred_region
          %v1523 = vld [vmem:[#allocation9] sm:$0xf]
          %v1524 = vld [vmem:[#allocation9 + $0x4] sm:$0xf]
          %v1525 = vld [vmem:[#allocation9 + $0x8] sm:$0xf]
          %v1526 = vld [vmem:[#allocation9 + $0xc] sm:$0xf]
          %v1527 = vld [vmem:[#allocation9 + $0x10] sm:$0xf]
          %v1528 = vld [vmem:[#allocation9 + $0x14] sm:$0xf]
          %v1529 = vld [vmem:[#allocation9 + $0x18] sm:$0xf]
          %v1530 = vld [vmem:[#allocation9 + $0x1c] sm:$0xf]
          %v1531 = vld [vmem:[#allocation9 + $0x20] sm:$0xf]
          %v1532 = vld [vmem:[#allocation9 + $0x24] sm:$0xf]
          %v1533 = vld [vmem:[#allocation9 + $0x28] sm:$0xf]
          %v1534 = vld [vmem:[#allocation9 + $0x2c] sm:$0xf]
          %v1535 = vld [vmem:[#allocation9 + $0x30] sm:$0xf]
          %v1536 = vld [vmem:[#allocation9 + $0x34] sm:$0xf]
          %v1537 = vld [vmem:[#allocation9 + $0x38] sm:$0xf]
          %v1538 = vld [vmem:[#allocation9 + $0x3c] sm:$0xf]
          %v1539 = vld [vmem:[%s4] sm:$0x1]
          %v1541 = vlaneseq
          %v1542 = vshrl.u32 %v1541, 7
          %v1543 = vsub.s32 0, %v1542
          %v1544 = vrot.slane %v1539, %v1543
          %v1562 = vunpack.c.l.b16 %v1523
          %v1563 = vunpack.c.l.b16 %v1524
          %v1564 = vunpack.c.l.b16 %v1525
          %v1565 = vunpack.c.l.b16 %v1526
          %v1566 = vunpack.c.l.b16 %v1527
          %v1567 = vunpack.c.l.b16 %v1528
          %v1568 = vunpack.c.l.b16 %v1529
          %v1569 = vunpack.c.l.b16 %v1530
          %v1570 = vunpack.c.l.b16 %v1531
          %v1571 = vunpack.c.l.b16 %v1532
          %v1572 = vunpack.c.l.b16 %v1533
          %v1573 = vunpack.c.l.b16 %v1534
          %v1574 = vunpack.c.l.b16 %v1535
          %v1575 = vunpack.c.l.b16 %v1536
          %v1576 = vunpack.c.l.b16 %v1537
          %v1577 = vunpack.c.l.b16 %v1538
          %v1578 = vpack.c.b16 %v1563, %v1562
          %v1579 = vpack.c.b16 %v1565, %v1564
          %v1580 = vpack.c.b16 %v1567, %v1566
          %v1581 = vpack.c.b16 %v1569, %v1568
          %v1582 = vpack.c.b16 %v1571, %v1570
          %v1583 = vpack.c.b16 %v1573, %v1572
          %v1584 = vpack.c.b16 %v1575, %v1574
          %v1585 = vpack.c.b16 %v1577, %v1576
          %1594 = vmatprep.subr.bf16.mxu0 0
          %1595 = vmatpush1.bf16.msra.mxu0 %v1585
          %1596 = vmatprep.subr.bf16.mxu0 0
          %1597 = vmatpush1.bf16.msra.mxu0 %v1584
          %1598 = vmatprep.subr.bf16.mxu0 0
          %1599 = vmatpush1.bf16.msra.mxu0 %v1583
          %1600 = vmatprep.subr.bf16.mxu0 0
          %1601 = vmatpush1.bf16.msra.mxu0 %v1582
          %1602 = vmatprep.subr.bf16.mxu0 0
          %1603 = vmatpush1.bf16.msra.mxu0 %v1581
          %1604 = vmatprep.subr.bf16.mxu0 0
          %1605 = vmatpush1.bf16.msra.mxu0 %v1580
          %1606 = vmatprep.subr.bf16.mxu0 0
          %1607 = vmatpush1.bf16.msra.mxu0 %v1579
          %1608 = vmatprep.subr.bf16.mxu0 0
          %1609 = vmatpush1.bf16.msra.mxu0 %v1578
          %1610 = vmatprep.subr.bf16.mxu0 0
          %1611 = vmatpush2.bf16.msra.mxu0 0
          %1612 = vmatprep.subr.bf16.mxu0 0
          %1613 = vmatpush2.bf16.msra.mxu0 0
          %1614 = vmatprep.subr.bf16.mxu0 0
          %1615 = vmatpush2.bf16.msra.mxu0 0
          %1616 = vmatprep.subr.bf16.mxu0 0
          %1617 = vmatpush2.bf16.msra.mxu0 0
          %1618 = vmatprep.subr.bf16.mxu0 0
          %1619 = vmatpush2.bf16.msra.mxu0 0
          %1620 = vmatprep.subr.bf16.mxu0 0
          %1621 = vmatpush2.bf16.msra.mxu0 0
          %1622 = vmatprep.subr.bf16.mxu0 0
          %1623 = vmatpush2.bf16.msra.mxu0 0
          %1624 = vmatprep.subr.bf16.mxu0 0
          %1625 = vmatpush2.bf16.msra.mxu0 0
          %1626 = vmatprep.mubr.bf16.mxu0 0
          %1627 = vmatmul.mubr.bf16.gmra.mxu0 %v1515
          %v1628 = vpop.f32.mrf.mxu0
          %v1629 = vadd.f32 %v1544, %v1628
          %v1630 = vpop.f32.mrf.mxu0
          %v1631 = vpop.f32.mrf.mxu0
          %v1632 = vpop.f32.mrf.mxu0
          %1633 = vdwg.mxu0
          %1634 = vmax.xlane.f32.xlu0 %v1629
          %v1635 = vpop.xlane.xlu0 %1634
          %v1636 = vsub.f32 %v1629, %v1635
          %v1637 = vmul.f32 %v1636, 1.442695
          %v1638 = vpow.pop %v1637
          %1639 = vadd.xlane.f32.xlu0 %v1638
          %v1640 = vpop.xlane.xlu0 %1639
          %v1641 = vrcp.pop %v1640
          %v1642 = vmul.f32 %v1638, %v1641
          %1643 = vst [vmem:[#allocation10] sm:$0xff] %v1642
        $region60: #{tpu_custom_call.1} parent=39 // pred_fallthru
          _
        // Predicated region
        $region61: #{tpu_custom_call.1} parent=39 // pred_check
          %p1644 = pneg %p168
        $region62: #{tpu_custom_call.1} parent=39 // pred_check_branch
          %1646 = sbr.rel (%p1644) target = $region64
        $region63: #{tpu_custom_call.1} parent=39 // pred_region
          %s1648 = ssub.s32 128, 128
          %1649 = vsyncadd [#allocation6], %s1648
          %s1650 = smul.addr %s25, 128
          %s1651 = scalar_lea.hbm %s5, %s1650
          %s1653 = sshll.u32 [#allocation10], 4
          %s1654 = int_to_ptr.vmem [resolvable:$true] %s1653
          %1656 = dma.vmem_to_hbm [thread:$0]  %s1654, 128, %s1651, [#allocation6]
        $region64: #{tpu_custom_call.1} parent=39 // pred_fallthru
          _
        // Predicated region
        $region65: #{tpu_custom_call.1} parent=39 // pred_check
          %p1657 = pneg %p168
        $region66: #{tpu_custom_call.1} parent=39 // pred_check_branch
          %1659 = sbr.rel (%p1657) target = $region68
        $region67: #{tpu_custom_call.1} parent=39 // pred_region
          %1660 = dma.done [#allocation6], 128
        $region68: #{tpu_custom_call.1} parent=39 // pred_fallthru
          _
      $region40: #{tpu_custom_call.1} parent=5 // pred_fallthru
        _
      %p1661 = scmp.le.s32.totalorder 2, %s16
      // Predicated region
      $region69: #{tpu_custom_call.1} parent=5 // pred_check
        %p1662 = pneg %p1661
      $region70: #{tpu_custom_call.1} parent=5 // pred_check_branch
        %1664 = sbr.rel (%p1662) target = $region72
      $region71: #{tpu_custom_call.1} parent=5 // pred_region
        %s1665 = ssub.s32 %s16, 2
      $region72: #{tpu_custom_call.1} parent=5 // pred_fallthru
        _
    $region6: #{tpu_custom_call.1} parent=1 // loop_footer
      %s20 = sadd.s32 1, %s16
    $region7: #{tpu_custom_call.1} parent=1 // loop_footer_branch
      %15 = sbr.rel target = $region3
    $region8: #{tpu_custom_call.1} parent=1 // loop_exit
      _
    %1666 = vsyncpa [#allocation5], 1
    %s1667 = scalar_lea.sflag [#allocation5], 1
    %1668 = vsyncpa %s1667, 1
    %1669 = vsyncpa [#allocation8], 1
    %1670 = vsyncpa [#allocation6], 1
    %s1671 = scalar_lea.sflag [#allocation6], 1
    %1672 = vsyncpa %s1671, 1

</llo_original>
